<compile_context>
chip_gen: v5e
topology: v5e:2x2
jax: 0.10.0
libtpu: 0.0.40
codegen_flags: <defaults>
</compile_context>

<pallas_src>
import functools
import math

import jax
import jax.numpy as jnp
from jax.experimental import pallas as pl
from jax.experimental.pallas import tpu as pltpu


# ---------------------------------------------------------------------------
# Conv layers via im2col -> fused matmul + bias + ReLU (bf16 in, f32 acc).
# ---------------------------------------------------------------------------
def _conv_gemm_kernel(x_ref, w_ref, b_ref, o_ref):
    acc = jnp.dot(x_ref[...], w_ref[...], preferred_element_type=jnp.float32)
    acc = jnp.maximum(acc + b_ref[...], 0.0)
    o_ref[...] = acc.astype(o_ref.dtype)


def _choose_tile_m(M, rows_per_image, target=512, max_tm=2048):
    """Pick an M tile that divides M exactly (no pad / slice HBM traffic) and is
    sublane (8) aligned, preferring a whole-image multiple near `target`."""
    if M <= 1024:
        return M                                    # single block == full array dims
    best = None
    r = 1
    while rows_per_image * r <= max_tm:
        tm = rows_per_image * r
        if tm % 8 == 0 and M % tm == 0:
            if best is None or abs(tm - target) < abs(best - target):
                best = tm
        r += 1
    return best                                     # None -> caller pads (rare)


def conv_gemm(patches, w, b, rows_per_image):
    """y = relu(patches @ w + b).  patches:(M,K) bf16, w:(K,N) bf16, b:(1,N) f32."""
    M, K = patches.shape
    Kw, N = w.shape
    assert K == Kw and b.shape == (1, N)

    tm = _choose_tile_m(M, rows_per_image)
    if tm is None:
        # Rare fallback (batch not factorable into aligned whole-image tiles).
        tm = 512
        Mp = pl.cdiv(M, tm) * tm
        patches = jnp.pad(patches, ((0, Mp - M), (0, 0)))
    else:
        Mp = M
    grid = (Mp // tm,)

    out = pl.pallas_call(
        _conv_gemm_kernel,
        out_shape=jax.ShapeDtypeStruct((Mp, N), jnp.bfloat16),
        grid_spec=pltpu.PrefetchScalarGridSpec(
            num_scalar_prefetch=0,
            grid=grid,
            in_specs=[
                pl.BlockSpec((tm, K), lambda i: (i, 0)),
                pl.BlockSpec((K, N), lambda i: (0, 0)),
                pl.BlockSpec((1, N), lambda i: (0, 0)),
            ],
            out_specs=pl.BlockSpec((tm, N), lambda i: (i, 0)),
        ),
        compiler_params=pltpu.CompilerParams(
            dimension_semantics=("parallel",)),
        cost_estimate=pl.CostEstimate(
            flops=2 * Mp * K * N,
            transcendentals=0,
            bytes_accessed=2 * (Mp * K + K * N + Mp * N) + 4 * N),
    )(patches, w, b)
    return out if Mp == M else out[:M]


# ---------------------------------------------------------------------------
# Dueling heads: both FC stacks + dueling combine in ONE kernel.
# K-tiled accumulation over the concatenated (Kp, 2H) bf16 weight, f32 scratch.
# ---------------------------------------------------------------------------
def _dueling_kernel(x_ref, w1_ref, b1_ref, wa2_ref, ba2_ref, wv2_ref, bv2_ref,
                    q_ref, acc_ref):
    k = pl.program_id(1)

    @pl.when(k == 0)
    def _():
        acc_ref[...] = jnp.zeros_like(acc_ref)

    acc_ref[...] += jnp.dot(x_ref[...], w1_ref[...],
                            preferred_element_type=jnp.float32)

    @pl.when(k == pl.num_programs(1) - 1)
    def _():
        h = jnp.maximum(acc_ref[...] + b1_ref[...], 0.0)      # (tb, 2H) f32
        H = wa2_ref.shape[0]
        adv = (jnp.dot(h[:, :H], wa2_ref[...],
                       preferred_element_type=jnp.float32) + ba2_ref[...])
        # Value head: N=1 projection as multiply + lane reduce (VPU/XLU),
        # not a wasteful 1-column MXU matmul.
        val = jnp.sum(h[:, H:] * wv2_ref[...], axis=-1, keepdims=True) + bv2_ref[...]
        q_ref[...] = (val + adv - jnp.mean(adv, axis=-1, keepdims=True)
                      ).astype(q_ref.dtype)


def dueling_head(feats, prep, *, tile_b=512):
    """feats: (B, Kp) bf16 (already padded to prep['Kp']).  Returns (B, A) f32."""
    B, Kp = feats.shape
    tile_k = prep["tile_k"]
    w1, b1 = prep["w1"], prep["b1"]
    wa2, ba2, wv2, bv2 = prep["wa2"], prep["ba2"], prep["wv2"], prep["bv2"]
    H, A = wa2.shape

    if B <= tile_b:
        tb, Bp = B, B
    else:
        tb = tile_b
        Bp = pl.cdiv(B, tb) * tb
        if Bp != B:
            feats = jnp.pad(feats, ((0, Bp - B), (0, 0)))
    grid = (Bp // tb, Kp // tile_k)

    q = pl.pallas_call(
        _dueling_kernel,
        out_shape=jax.ShapeDtypeStruct((Bp, A), jnp.float32),
        grid_spec=pltpu.PrefetchScalarGridSpec(
            num_scalar_prefetch=0,
            grid=grid,
            in_specs=[
                pl.BlockSpec((tb, tile_k), lambda i, k: (i, k)),     # features
                pl.BlockSpec((tile_k, 2 * H), lambda i, k: (k, 0)),  # wa1 || wv1
                pl.BlockSpec((1, 2 * H), lambda i, k: (0, 0)),       # ba1 || bv1
                pl.BlockSpec((H, A), lambda i, k: (0, 0)),           # wa2
                pl.BlockSpec((1, A), lambda i, k: (0, 0)),           # ba2
                pl.BlockSpec((1, H), lambda i, k: (0, 0)),           # wv2 (row)
                pl.BlockSpec((1, 1), lambda i, k: (0, 0)),           # bv2
            ],
            out_specs=pl.BlockSpec((tb, A), lambda i, k: (i, 0)),
            scratch_shapes=[pltpu.VMEM((tb, 2 * H), jnp.float32)],
        ),
        compiler_params=pltpu.CompilerParams(
            dimension_semantics=("parallel", "arbitrary"),
            vmem_limit_bytes=32 * 1024 * 1024),
        cost_estimate=pl.CostEstimate(
            flops=2 * Bp * Kp * 2 * H + 2 * Bp * H * (A + 1),
            transcendentals=0,
            bytes_accessed=2 * (Bp * Kp + Kp * 2 * H)
                           + 4 * (2 * H + H * A + A + H + 1 + Bp * A)),
    )(feats, w1, b1, wa2, ba2, wv2, bv2)
    return q if Bp == B else q[:B]


# ---------------------------------------------------------------------------
# Wrapper: im2col lowering of the convs + full forward pass.
# ---------------------------------------------------------------------------
def _im2col(x, kh, kw, stride):
    """x: (B,H,W,C) -> patches (B*oh*ow, kh*kw*C) in (kh, kw, c) feature order."""
    B, Hh, Ww, C = x.shape
    oh = (Hh - kh) // stride + 1
    ow = (Ww - kw) // stride + 1
    patches = jnp.stack(
        [jnp.stack(
            [x[:, i:i + stride * oh:stride, j:j + stride * ow:stride, :]
             for j in range(kw)], axis=3)
         for i in range(kh)], axis=3)                # (B, oh, ow, kh, kw, C)
    return patches.reshape(B * oh * ow, kh * kw * C), oh, ow


def atari_dueling_q_forward(x, prep):
    """x: (B,H,W,C) image in [0,255] (NHWC).  Returns (B, acs_dim) q-values."""
    if x.ndim == 3:                                  # PreprocessImg.unsqueeze(0)
        x = x[None]
    # 0..255 integer pixels are exactly representable in bf16; the /255 of
    # PreprocessImg is folded into the (tiny) conv1 weight matrix.
    h = x.astype(jnp.bfloat16)
    for (wm, b, (kh, kw, stride)) in prep["conv"]:
        patches, oh, ow = _im2col(h, kh, kw, stride)
        out = conv_gemm(patches, wm, b, rows_per_image=oh * ow)
        h = out.reshape(h.shape[0], oh, ow, wm.shape[1])
    B = h.shape[0]
    # PyTorch flattens in NCHW order -> keep the same (C, H, W) feature order.
    feats = jnp.transpose(h, (0, 3, 1, 2)).reshape(B, -1)
    feats = jnp.pad(feats, ((0, 0), (0, prep["Kp"] - feats.shape[1])))
    return dueling_head(feats, prep)


# ---------------------------------------------------------------------------
# Parameter init (PyTorch-style) + one-time kernel-ready prep + references.
# ---------------------------------------------------------------------------
def init_params(key, in_channels, acs_dim):
    def uniform(k, shape, bound):
        return jax.random.uniform(k, shape, jnp.float32, -bound, bound)

    params = {"conv": []}
    conv_cfg = [(in_channels, 32, 8, 4), (32, 64, 4, 2), (64, 64, 3, 1)]
    for (cin, cout, ksz, stride) in conv_cfg:
        key, kw_, kb_ = jax.random.split(key, 3)
        bound = 1.0 / math.sqrt(cin * ksz * ksz)
        w = uniform(kw_, (ksz, ksz, cin, cout), bound)     # HWIO layout
        b = uniform(kb_, (1, cout), bound)
        params["conv"].append((w, b, stride))

    feat_dim, hidden = 3136, 512
    b1 = 1.0 / math.sqrt(feat_dim)
    b2 = 1.0 / math.sqrt(hidden)
    key, k1, k2, k3, k4 = jax.random.split(key, 5)
    params["wa1"] = uniform(k1, (feat_dim, hidden), b1)
    params["ba1"] = uniform(k2, (1, hidden), b1)
    params["wa2"] = uniform(k3, (hidden, acs_dim), b2)
    params["ba2"] = uniform(k4, (1, acs_dim), b2)
    key, k1, k2, k3, k4 = jax.random.split(key, 5)
    params["wv1"] = uniform(k1, (feat_dim, hidden), b1)
    params["bv1"] = uniform(k2, (1, hidden), b1)
    params["wv2"] = uniform(k3, (1, hidden), b2)           # row layout (lane-reduce)
    params["bv2"] = uniform(k4, (1, 1), b2)
    return params


def prepare_params(params, *, tile_k=1792):
    """One-time conversion of module params to kernel-ready form:
       conv weights -> (kh*kw*C, cout) bf16 GEMM matrices with 1/255 folded into
       conv1; wa1||wv1 concatenated, K pre-padded 3136 -> 3584, cast to bf16.
       All per-forward pad/scale/concat HBM traffic is paid exactly once here."""
    prep = {"conv": []}
    first = True
    for (w, b, stride) in params["conv"]:
        kh, kw, cin, cout = w.shape
        wm = w.reshape(kh * kw * cin, cout)
        if first:
            wm = wm * (1.0 / 255.0)          # PreprocessImg: x / 255
            first = False
        prep["conv"].append((wm.astype(jnp.bfloat16),
                             b.astype(jnp.float32), (kh, kw, stride)))

    K, H = params["wa1"].shape
    Kp = pl.cdiv(K, tile_k) * tile_k
    w1 = jnp.concatenate([params["wa1"], params["wv1"]], axis=1)       # (K, 2H)
    w1 = jnp.pad(w1, ((0, Kp - K), (0, 0))).astype(jnp.bfloat16)
    b1 = jnp.concatenate([params["ba1"], params["bv1"]], axis=1)       # (1, 2H)
    prep.update(w1=w1, b1=b1,
                wa2=params["wa2"], ba2=params["ba2"],
                wv2=params["wv2"], bv2=params["bv2"],
                K=K, Kp=Kp, tile_k=tile_k, hidden=H)
    return prep


def atari_dueling_q_ref_f32(x, params):
    """Pure-f32 JAX reference (lax.conv), matching the PyTorch module exactly."""
    if x.ndim == 3:
        x = x[None]
    h = x.astype(jnp.float32) / 255.0
    for (w, b, stride) in params["conv"]:
        h = jax.lax.conv_general_dilated(
            h, w, window_strides=(stride, stride), padding="VALID",
            dimension_numbers=("NHWC", "HWIO", "NHWC"))
        h = jax.nn.relu(h + b)
    B = h.shape[0]
    f = jnp.transpose(h, (0, 3, 1, 2)).reshape(B, -1)
    ha = jax.nn.relu(f @ params["wa1"] + params["ba1"])
    adv = ha @ params["wa2"] + params["ba2"]
    hv = jax.nn.relu(f @ params["wv1"] + params["bv1"])
    val = hv @ params["wv2"].T + params["bv2"]
    return val + adv - jnp.mean(adv, axis=-1, keepdims=True)


def atari_dueling_q_ref_bf16(x, prep):
    """Quantization-matched XLA reference (same bf16 weights / activations):
    isolates kernel correctness from the expected bf16-vs-f32 drift."""
    if x.ndim == 3:
        x = x[None]
    h = x.astype(jnp.bfloat16)
    for (wm, b, (kh, kw, stride)) in prep["conv"]:
        patches, oh, ow = _im2col(h, kh, kw, stride)
        out = jnp.maximum(
            jnp.dot(patches, wm, preferred_element_type=jnp.float32) + b, 0.0)
        h = out.astype(jnp.bfloat16).reshape(h.shape[0], oh, ow, wm.shape[1])
    B = h.shape[0]
    feats = jnp.transpose(h, (0, 3, 1, 2)).reshape(B, -1)
    feats = jnp.pad(feats, ((0, 0), (0, prep["Kp"] - feats.shape[1])))
    hh = jnp.maximum(
        jnp.dot(feats, prep["w1"], preferred_element_type=jnp.float32)
        + prep["b1"], 0.0)
    H = prep["hidden"]
    adv = hh[:, :H] @ prep["wa2"] + prep["ba2"]
    val = jnp.sum(hh[:, H:] * prep["wv2"], axis=-1, keepdims=True) + prep["bv2"]
    return val + adv - jnp.mean(adv, axis=-1, keepdims=True)


if __name__ == "__main__":
    # 84x84 spatial is required by the module's hard-coded Linear(3136, 512).
    in_channels, acs_dim = 4, 6
    batch, Himg, Wimg = 2, 84, 84

    key = jax.random.PRNGKey(0)
    key, kx = jax.random.split(key)
    x = jax.random.randint(kx, (batch, Himg, Wimg, in_channels), 0, 256
                           ).astype(jnp.float32)
    params = init_params(key, in_channels, acs_dim)
    prep = prepare_params(params)

    out = jax.block_until_ready(atari_dueling_q_forward(x, prep))
    assert out.shape == (batch, acs_dim)

    # Tight check vs the bf16-quantization-matched XLA reference.
    ref_bf16 = atari_dueling_q_ref_bf16(x, prep)
    err = float(jnp.max(jnp.abs(out - ref_bf16)))
    assert err < 2e-3, f"mismatch vs matched bf16 reference: {err}"

    # Loose check vs the pure-f32 PyTorch-equivalent reference (bf16 weights
    # introduce small, expected drift).
    ref_f32 = atari_dueling_q_ref_f32(x, params)
    err32 = float(jnp.max(jnp.abs(out - ref_f32)))
    assert err32 < 5e-2, f"drift vs f32 reference too large: {err32}"

    print("KERNEL_OK")
</pallas_src>

<mosaic_0001>
module attributes {stable_mosaic.version = 11 : i64} {
  func.func @_conv_gemm_kernel(%arg0: i32, %arg1: memref<800x256xbf16, #tpu.memory_space<vmem>>, %arg2: memref<256x32xbf16, #tpu.memory_space<vmem>>, %arg3: memref<1x32xf32, #tpu.memory_space<vmem>>, %arg4: memref<800x32xbf16, #tpu.memory_space<vmem>>) attributes {dimension_semantics = [#tpu.dimension_semantics<parallel>], iteration_bounds = array<i64: 1>, scalar_prefetch = 0 : i64, scratch_operands = 0 : i64, tpu.core_type = #tpu.core_type<tc>, window_params = [{transform_indices = @transform_0, window_bounds = array<i64: 800, 256>}, {pipeline_mode = #tpu.pipeline_mode<synchronous>, transform_indices = @transform_1, window_bounds = array<i64: 256, 32>}, {pipeline_mode = #tpu.pipeline_mode<synchronous>, transform_indices = @transform_2, window_bounds = array<i64: 1, 32>}, {transform_indices = @transform_3, window_bounds = array<i64: 800, 32>}]} {
    %c0 = arith.constant 0 : index
    %c0_0 = arith.constant 0 : index
    %0 = vector.load %arg1[%c0, %c0_0] : memref<800x256xbf16, #tpu.memory_space<vmem>>, vector<800x256xbf16>
    %c0_1 = arith.constant 0 : index
    %c0_2 = arith.constant 0 : index
    %1 = vector.load %arg2[%c0_1, %c0_2] : memref<256x32xbf16, #tpu.memory_space<vmem>>, vector<256x32xbf16>
    %cst = arith.constant dense<0.000000e+00> : vector<800x32xf32>
    %2 = tpu.matmul %0, %1, %cst {dimension_numbers = #tpu.dot_dimension_numbers<[1], [0], [0], [1], [0, 0, 1, 1], [], []>} : vector<800x256xbf16>, vector<256x32xbf16>, vector<800x32xf32> -> vector<800x32xf32>
    %c0_3 = arith.constant 0 : index
    %c0_4 = arith.constant 0 : index
    %3 = vector.load %arg3[%c0_3, %c0_4] : memref<1x32xf32, #tpu.memory_space<vmem>>, vector<1x32xf32>
    %4 = vector.broadcast %3 : vector<1x32xf32> to vector<800x32xf32>
    %5 = arith.addf %2, %4 : vector<800x32xf32>
    %cst_5 = arith.constant 0.000000e+00 : f32
    %6 = vector.broadcast %cst_5 : f32 to vector<800x32xf32>
    %7 = arith.maximumf %5, %6 : vector<800x32xf32>
    %8 = arith.truncf %7 : vector<800x32xf32> to vector<800x32xbf16>
    %c0_6 = arith.constant 0 : index
    %c0_7 = arith.constant 0 : index
    %9 = vector.load %arg4[%c0_6, %c0_7] : memref<800x32xbf16, #tpu.memory_space<vmem>>, vector<800x32xbf16>
    tpu.vector_store %arg4[%c0_6, %c0_7], %8 {strides = array<i32>} : memref<800x32xbf16, #tpu.memory_space<vmem>>, vector<800x32xbf16>,
    return
  }
  func.func @transform_0(%arg0: i32) -> (i32, i32) {
    %c0_i32 = arith.constant 0 : i32
    %c0_i32_0 = arith.constant 0 : i32
    return %arg0, %c0_i32 : i32, i32
  }
  func.func @transform_1(%arg0: i32) -> (i32, i32) {
    %c0_i32 = arith.constant 0 : i32
    %c0_i32_0 = arith.constant 0 : i32
    %c0_i32_1 = arith.constant 0 : i32
    return %c0_i32, %c0_i32_0 : i32, i32
  }
  func.func @transform_2(%arg0: i32) -> (i32, i32) {
    %c0_i32 = arith.constant 0 : i32
    %c0_i32_0 = arith.constant 0 : i32
    %c0_i32_1 = arith.constant 0 : i32
    return %c0_i32, %c0_i32_0 : i32, i32
  }
  func.func @transform_3(%arg0: i32) -> (i32, i32) {
    %c0_i32 = arith.constant 0 : i32
    %c0_i32_0 = arith.constant 0 : i32
    return %arg0, %c0_i32 : i32, i32
  }
}

</mosaic_0001>

<llo_original>
// kernel: tpu_custom_call.1
$region0: #{tpu_custom_call.1}
  #allocation0 [shape = 'u32[]', space=smem, size = 0x4, offset = 0x4, fixed_abs, tag = 'smem constant byte address 0x4 - core index']
  #allocation1 [shape = 'u32[72,128]{1,0:T(1,128)}', space=vmem, size = 0x9000, scoped, tag = 'internal scratch']
  %s0 = inlined_call_operand.hbm [shape: bf16[800,256], index: 0, kind: input, shape index: {}]
  %s1 = inlined_call_operand.vmem [shape: bf16[256,32], index: 1, kind: input, shape index: {}]
  %s2 = inlined_call_operand.vmem [shape: f32[1,32], index: 2, kind: input, shape index: {}]
  %s3 = inlined_call_operand.vmem [shape: bf16[800,32], index: 3, kind: output, shape index: {}]
  %s4 = sld [smem:[#allocation0]]
  $region26: #{tpu_custom_call.1} parent=0
    _
  %s6 = ssub.s32 1, %s4
  %s7 = scalar_select 0, %s6, %s4
  $region1: #{tpu_custom_call.1} parent=0
    #allocation2 [shape = 'u8[409600]{0}', space=vmem, size = 0x64000, scoped, tag = 'input window, operand 0, single buffered']
    #allocation3 [shape = 's32[1]{0}', space=sflag, size = 0x4, scoped, tag = 'scoped memory for tpu_custom_call.1']
    %8 = vsyncpa [#allocation3], 0
    // Predicated region
    $region2: #{tpu_custom_call.1} parent=1 // pred_check
      _
    $region3: #{tpu_custom_call.1} parent=1 // pred_check_branch
      %10 = sbr.rel (0) target = $region5
    $region4: #{tpu_custom_call.1} parent=1 // pred_region
      %12 = vsyncadd [#allocation3], 0
      %s13 = sshll.u32 %s0, 4
      %s14 = int_to_ptr.hbm [resolvable:$true] %s13
      %s15 = sshll.u32 [#allocation2], 4
      %s16 = int_to_ptr.vmem [resolvable:$true] %s15
      %21 = dma.hbm_to_vmem [thread:$0]  %s14, 12800, %s16, [#allocation3], 128, 128, 8
    $region5: #{tpu_custom_call.1} parent=1 // pred_fallthru
      _
    // Predicated region
    $region6: #{tpu_custom_call.1} parent=1 // pred_check
      _
    $region7: #{tpu_custom_call.1} parent=1 // pred_check_branch
      %23 = sbr.rel (0) target = $region9
    $region8: #{tpu_custom_call.1} parent=1 // pred_region
      _
    $region9: #{tpu_custom_call.1} parent=1 // pred_fallthru
      _
    // Predicated region
    $region10: #{tpu_custom_call.1} parent=1 // pred_check
      _
    $region11: #{tpu_custom_call.1} parent=1 // pred_check_branch
      %25 = sbr.rel (0) target = $region13
    $region12: #{tpu_custom_call.1} parent=1 // pred_region
      _
    $region13: #{tpu_custom_call.1} parent=1 // pred_fallthru
      _
    // Predicated region
    $region14: #{tpu_custom_call.1} parent=1 // pred_check
      _
    $region15: #{tpu_custom_call.1} parent=1 // pred_check_branch
      %27 = sbr.rel (0) target = $region17
    $region16: #{tpu_custom_call.1} parent=1 // pred_region
      %29 = dma.done [#allocation3], 12800
    $region17: #{tpu_custom_call.1} parent=1 // pred_fallthru
      _
    %v30 = vld [vmem:[#allocation2] sm:$0xff]
    %v31 = vld [vmem:[#allocation2 + $0x8] sm:$0xff]
    %v32 = vld [vmem:[#allocation2 + $0x10] sm:$0xff]
    %v33 = vld [vmem:[#allocation2 + $0x18] sm:$0xff]
    %v34 = vld [vmem:[#allocation2 + $0x20] sm:$0xff]
    %v35 = vld [vmem:[#allocation2 + $0x28] sm:$0xff]
    %v36 = vld [vmem:[#allocation2 + $0x30] sm:$0xff]
    %v37 = vld [vmem:[#allocation2 + $0x38] sm:$0xff]
    %v38 = vld [vmem:[#allocation2 + $0x40] sm:$0xff]
    %v39 = vld [vmem:[#allocation2 + $0x48] sm:$0xff]
    %v40 = vld [vmem:[#allocation2 + $0x50] sm:$0xff]
    %v41 = vld [vmem:[#allocation2 + $0x58] sm:$0xff]
    %v42 = vld [vmem:[#allocation2 + $0x60] sm:$0xff]
    %v43 = vld [vmem:[#allocation2 + $0x68] sm:$0xff]
    %v44 = vld [vmem:[#allocation2 + $0x70] sm:$0xff]
    %v45 = vld [vmem:[#allocation2 + $0x78] sm:$0xff]
    %v46 = vld [vmem:[#allocation2 + $0x80] sm:$0xff]
    %v47 = vld [vmem:[#allocation2 + $0x88] sm:$0xff]
    %v48 = vld [vmem:[#allocation2 + $0x90] sm:$0xff]
    %v49 = vld [vmem:[#allocation2 + $0x98] sm:$0xff]
    %v50 = vld [vmem:[#allocation2 + $0xa0] sm:$0xff]
    %v51 = vld [vmem:[#allocation2 + $0xa8] sm:$0xff]
    %v52 = vld [vmem:[#allocation2 + $0xb0] sm:$0xff]
    %v53 = vld [vmem:[#allocation2 + $0xb8] sm:$0xff]
    %v54 = vld [vmem:[#allocation2 + $0xc0] sm:$0xff]
    %v55 = vld [vmem:[#allocation2 + $0xc8] sm:$0xff]
    %v56 = vld [vmem:[#allocation2 + $0xd0] sm:$0xff]
    %v57 = vld [vmem:[#allocation2 + $0xd8] sm:$0xff]
    %v58 = vld [vmem:[#allocation2 + $0xe0] sm:$0xff]
    %v59 = vld [vmem:[#allocation2 + $0xe8] sm:$0xff]
    %v60 = vld [vmem:[#allocation2 + $0xf0] sm:$0xff]
    %v61 = vld [vmem:[#allocation2 + $0xf8] sm:$0xff]
    %v62 = vld [vmem:[#allocation2 + $0x100] sm:$0xff]
    %v63 = vld [vmem:[#allocation2 + $0x108] sm:$0xff]
    %v64 = vld [vmem:[#allocation2 + $0x110] sm:$0xff]
    %v65 = vld [vmem:[#allocation2 + $0x118] sm:$0xff]
    %v66 = vld [vmem:[#allocation2 + $0x120] sm:$0xff]
    %v67 = vld [vmem:[#allocation2 + $0x128] sm:$0xff]
    %v68 = vld [vmem:[#allocation2 + $0x130] sm:$0xff]
    %v69 = vld [vmem:[#allocation2 + $0x138] sm:$0xff]
    %v70 = vld [vmem:[#allocation2 + $0x140] sm:$0xff]
    %v71 = vld [vmem:[#allocation2 + $0x148] sm:$0xff]
    %v72 = vld [vmem:[#allocation2 + $0x150] sm:$0xff]
    %v73 = vld [vmem:[#allocation2 + $0x158] sm:$0xff]
    %v74 = vld [vmem:[#allocation2 + $0x160] sm:$0xff]
    %v75 = vld [vmem:[#allocation2 + $0x168] sm:$0xff]
    %v76 = vld [vmem:[#allocation2 + $0x170] sm:$0xff]
    %v77 = vld [vmem:[#allocation2 + $0x178] sm:$0xff]
    %v78 = vld [vmem:[#allocation2 + $0x180] sm:$0xff]
    %v79 = vld [vmem:[#allocation2 + $0x188] sm:$0xff]
    %v80 = vld [vmem:[#allocation2 + $0x190] sm:$0xff]
    %v81 = vld [vmem:[#allocation2 + $0x198] sm:$0xff]
    %v82 = vld [vmem:[#allocation2 + $0x1a0] sm:$0xff]
    %v83 = vld [vmem:[#allocation2 + $0x1a8] sm:$0xff]
    %v84 = vld [vmem:[#allocation2 + $0x1b0] sm:$0xff]
    %v85 = vld [vmem:[#allocation2 + $0x1b8] sm:$0xff]
    %v86 = vld [vmem:[#allocation2 + $0x1c0] sm:$0xff]
    %v87 = vld [vmem:[#allocation2 + $0x1c8] sm:$0xff]
    %v88 = vld [vmem:[#allocation2 + $0x1d0] sm:$0xff]
    %v89 = vld [vmem:[#allocation2 + $0x1d8] sm:$0xff]
    %v90 = vld [vmem:[#allocation2 + $0x1e0] sm:$0xff]
    %v91 = vld [vmem:[#allocation2 + $0x1e8] sm:$0xff]
    %v92 = vld [vmem:[#allocation2 + $0x1f0] sm:$0xff]
    %v93 = vld [vmem:[#allocation2 + $0x1f8] sm:$0xff]
    %v94 = vld [vmem:[#allocation2 + $0x200] sm:$0xff]
    %v95 = vld [vmem:[#allocation2 + $0x208] sm:$0xff]
    %v96 = vld [vmem:[#allocation2 + $0x210] sm:$0xff]
    %v97 = vld [vmem:[#allocation2 + $0x218] sm:$0xff]
    %v98 = vld [vmem:[#allocation2 + $0x220] sm:$0xff]
    %v99 = vld [vmem:[#allocation2 + $0x228] sm:$0xff]
    %v100 = vld [vmem:[#allocation2 + $0x230] sm:$0xff]
    %v101 = vld [vmem:[#allocation2 + $0x238] sm:$0xff]
    %v102 = vld [vmem:[#allocation2 + $0x240] sm:$0xff]
    %v103 = vld [vmem:[#allocation2 + $0x248] sm:$0xff]
    %v104 = vld [vmem:[#allocation2 + $0x250] sm:$0xff]
    %v105 = vld [vmem:[#allocation2 + $0x258] sm:$0xff]
    %v106 = vld [vmem:[#allocation2 + $0x260] sm:$0xff]
    %v107 = vld [vmem:[#allocation2 + $0x268] sm:$0xff]
    %v108 = vld [vmem:[#allocation2 + $0x270] sm:$0xff]
    %v109 = vld [vmem:[#allocation2 + $0x278] sm:$0xff]
    %v110 = vld [vmem:[#allocation2 + $0x280] sm:$0xff]
    %v111 = vld [vmem:[#allocation2 + $0x288] sm:$0xff]
    %v112 = vld [vmem:[#allocation2 + $0x290] sm:$0xff]
    %v113 = vld [vmem:[#allocation2 + $0x298] sm:$0xff]
    %v114 = vld [vmem:[#allocation2 + $0x2a0] sm:$0xff]
    %v115 = vld [vmem:[#allocation2 + $0x2a8] sm:$0xff]
    %v116 = vld [vmem:[#allocation2 + $0x2b0] sm:$0xff]
    %v117 = vld [vmem:[#allocation2 + $0x2b8] sm:$0xff]
    %v118 = vld [vmem:[#allocation2 + $0x2c0] sm:$0xff]
    %v119 = vld [vmem:[#allocation2 + $0x2c8] sm:$0xff]
    %v120 = vld [vmem:[#allocation2 + $0x2d0] sm:$0xff]
    %v121 = vld [vmem:[#allocation2 + $0x2d8] sm:$0xff]
    %v122 = vld [vmem:[#allocation2 + $0x2e0] sm:$0xff]
    %v123 = vld [vmem:[#allocation2 + $0x2e8] sm:$0xff]
    %v124 = vld [vmem:[#allocation2 + $0x2f0] sm:$0xff]
    %v125 = vld [vmem:[#allocation2 + $0x2f8] sm:$0xff]
    %v126 = vld [vmem:[#allocation2 + $0x300] sm:$0xff]
    %v127 = vld [vmem:[#allocation2 + $0x308] sm:$0xff]
    %v128 = vld [vmem:[#allocation2 + $0x310] sm:$0xff]
    %v129 = vld [vmem:[#allocation2 + $0x318] sm:$0xff]
    %v130 = vld [vmem:[%s1] sm:$0xf]
    %v131 = vld [vmem:[%s1 + $0x4] sm:$0xf]
    %v132 = vld [vmem:[%s1 + $0x8] sm:$0xf]
    %v133 = vld [vmem:[%s1 + $0xc] sm:$0xf]
    %v134 = vld [vmem:[%s1 + $0x10] sm:$0xf]
    %v135 = vld [vmem:[%s1 + $0x14] sm:$0xf]
    %v136 = vld [vmem:[%s1 + $0x18] sm:$0xf]
    %v137 = vld [vmem:[%s1 + $0x1c] sm:$0xf]
    %v138 = vld [vmem:[%s1 + $0x20] sm:$0xf]
    %v139 = vld [vmem:[%s1 + $0x24] sm:$0xf]
    %v140 = vld [vmem:[%s1 + $0x28] sm:$0xf]
    %v141 = vld [vmem:[%s1 + $0x2c] sm:$0xf]
    %v142 = vld [vmem:[%s1 + $0x30] sm:$0xf]
    %v143 = vld [vmem:[%s1 + $0x34] sm:$0xf]
    %v144 = vld [vmem:[%s1 + $0x38] sm:$0xf]
    %v145 = vld [vmem:[%s1 + $0x3c] sm:$0xf]
    %v146 = vld [vmem:[%s1 + $0x40] sm:$0xf]
    %v147 = vld [vmem:[%s1 + $0x44] sm:$0xf]
    %v148 = vld [vmem:[%s1 + $0x48] sm:$0xf]
    %v149 = vld [vmem:[%s1 + $0x4c] sm:$0xf]
    %v150 = vld [vmem:[%s1 + $0x50] sm:$0xf]
    %v151 = vld [vmem:[%s1 + $0x54] sm:$0xf]
    %v152 = vld [vmem:[%s1 + $0x58] sm:$0xf]
    %v153 = vld [vmem:[%s1 + $0x5c] sm:$0xf]
    %v154 = vld [vmem:[%s1 + $0x60] sm:$0xf]
    %v155 = vld [vmem:[%s1 + $0x64] sm:$0xf]
    %v156 = vld [vmem:[%s1 + $0x68] sm:$0xf]
    %v157 = vld [vmem:[%s1 + $0x6c] sm:$0xf]
    %v158 = vld [vmem:[%s1 + $0x70] sm:$0xf]
    %v159 = vld [vmem:[%s1 + $0x74] sm:$0xf]
    %v160 = vld [vmem:[%s1 + $0x78] sm:$0xf]
    %v161 = vld [vmem:[%s1 + $0x7c] sm:$0xf]
    %v162 = vld [vmem:[%s2] sm:$0x1]
    %v164 = vperm.slane %v162, 0
    %v266 = vunpack.c.l.b16 %v30
    %v267 = vunpack.c.h.b16 %v30
    %v268 = vunpack.c.l.b16 %v31
    %v269 = vunpack.c.h.b16 %v31
    %v270 = vunpack.c.l.b16 %v32
    %v271 = vunpack.c.h.b16 %v32
    %v272 = vunpack.c.l.b16 %v33
    %v273 = vunpack.c.h.b16 %v33
    %v274 = vunpack.c.l.b16 %v34
    %v275 = vunpack.c.h.b16 %v34
    %v276 = vunpack.c.l.b16 %v35
    %v277 = vunpack.c.h.b16 %v35
    %v278 = vunpack.c.l.b16 %v36
    %v279 = vunpack.c.h.b16 %v36
    %v280 = vunpack.c.l.b16 %v37
    %v281 = vunpack.c.h.b16 %v37
    %v282 = vunpack.c.l.b16 %v38
    %v283 = vunpack.c.h.b16 %v38
    %v284 = vunpack.c.l.b16 %v39
    %v285 = vunpack.c.h.b16 %v39
    %v286 = vunpack.c.l.b16 %v40
    %v287 = vunpack.c.h.b16 %v40
    %v288 = vunpack.c.l.b16 %v41
    %v289 = vunpack.c.h.b16 %v41
    %v290 = vunpack.c.l.b16 %v42
    %v291 = vunpack.c.h.b16 %v42
    %v292 = vunpack.c.l.b16 %v43
    %v293 = vunpack.c.h.b16 %v43
    %v294 = vunpack.c.l.b16 %v44
    %v295 = vunpack.c.h.b16 %v44
    %v296 = vunpack.c.l.b16 %v45
    %v297 = vunpack.c.h.b16 %v45
    %v298 = vunpack.c.l.b16 %v46
    %v299 = vunpack.c.h.b16 %v46
    %v300 = vunpack.c.l.b16 %v47
    %v301 = vunpack.c.h.b16 %v47
    %v302 = vunpack.c.l.b16 %v48
    %v303 = vunpack.c.h.b16 %v48
    %v304 = vunpack.c.l.b16 %v49
    %v305 = vunpack.c.h.b16 %v49
    %v306 = vunpack.c.l.b16 %v50
    %v307 = vunpack.c.h.b16 %v50
    %v308 = vunpack.c.l.b16 %v51
    %v309 = vunpack.c.h.b16 %v51
    %v310 = vunpack.c.l.b16 %v52
    %v311 = vunpack.c.h.b16 %v52
    %v312 = vunpack.c.l.b16 %v53
    %v313 = vunpack.c.h.b16 %v53
    %v314 = vunpack.c.l.b16 %v54
    %v315 = vunpack.c.h.b16 %v54
    %v316 = vunpack.c.l.b16 %v55
    %v317 = vunpack.c.h.b16 %v55
    %v318 = vunpack.c.l.b16 %v56
    %v319 = vunpack.c.h.b16 %v56
    %v320 = vunpack.c.l.b16 %v57
    %v321 = vunpack.c.h.b16 %v57
    %v322 = vunpack.c.l.b16 %v58
    %v323 = vunpack.c.h.b16 %v58
    %v324 = vunpack.c.l.b16 %v59
    %v325 = vunpack.c.h.b16 %v59
    %v326 = vunpack.c.l.b16 %v60
    %v327 = vunpack.c.h.b16 %v60
    %v328 = vunpack.c.l.b16 %v61
    %v329 = vunpack.c.h.b16 %v61
    %v330 = vunpack.c.l.b16 %v62
    %v331 = vunpack.c.h.b16 %v62
    %v332 = vunpack.c.l.b16 %v63
    %v333 = vunpack.c.h.b16 %v63
    %v334 = vunpack.c.l.b16 %v64
    %v335 = vunpack.c.h.b16 %v64
    %v336 = vunpack.c.l.b16 %v65
    %v337 = vunpack.c.h.b16 %v65
    %v338 = vunpack.c.l.b16 %v66
    %v339 = vunpack.c.h.b16 %v66
    %v340 = vunpack.c.l.b16 %v67
    %v341 = vunpack.c.h.b16 %v67
    %v342 = vunpack.c.l.b16 %v68
    %v343 = vunpack.c.h.b16 %v68
    %v344 = vunpack.c.l.b16 %v69
    %v345 = vunpack.c.h.b16 %v69
    %v346 = vunpack.c.l.b16 %v70
    %v347 = vunpack.c.h.b16 %v70
    %v348 = vunpack.c.l.b16 %v71
    %v349 = vunpack.c.h.b16 %v71
    %v350 = vunpack.c.l.b16 %v72
    %v351 = vunpack.c.h.b16 %v72
    %v352 = vunpack.c.l.b16 %v73
    %v353 = vunpack.c.h.b16 %v73
    %v354 = vunpack.c.l.b16 %v74
    %v355 = vunpack.c.h.b16 %v74
    %v356 = vunpack.c.l.b16 %v75
    %v357 = vunpack.c.h.b16 %v75
    %v358 = vunpack.c.l.b16 %v76
    %v359 = vunpack.c.h.b16 %v76
    %v360 = vunpack.c.l.b16 %v77
    %v361 = vunpack.c.h.b16 %v77
    %v362 = vunpack.c.l.b16 %v78
    %v363 = vunpack.c.h.b16 %v78
    %v364 = vunpack.c.l.b16 %v79
    %v365 = vunpack.c.h.b16 %v79
    %v366 = vunpack.c.l.b16 %v80
    %v367 = vunpack.c.h.b16 %v80
    %v368 = vunpack.c.l.b16 %v81
    %v369 = vunpack.c.h.b16 %v81
    %v370 = vunpack.c.l.b16 %v82
    %v371 = vunpack.c.h.b16 %v82
    %v372 = vunpack.c.l.b16 %v83
    %v373 = vunpack.c.h.b16 %v83
    %v374 = vunpack.c.l.b16 %v84
    %v375 = vunpack.c.h.b16 %v84
    %v376 = vunpack.c.l.b16 %v85
    %v377 = vunpack.c.h.b16 %v85
    %v378 = vunpack.c.l.b16 %v86
    %v379 = vunpack.c.h.b16 %v86
    %v380 = vunpack.c.l.b16 %v87
    %v381 = vunpack.c.h.b16 %v87
    %v382 = vunpack.c.l.b16 %v88
    %v383 = vunpack.c.h.b16 %v88
    %v384 = vunpack.c.l.b16 %v89
    %v385 = vunpack.c.h.b16 %v89
    %v386 = vunpack.c.l.b16 %v90
    %v387 = vunpack.c.h.b16 %v90
    %v388 = vunpack.c.l.b16 %v91
    %v389 = vunpack.c.h.b16 %v91
    %v390 = vunpack.c.l.b16 %v92
    %v391 = vunpack.c.h.b16 %v92
    %v392 = vunpack.c.l.b16 %v93
    %v393 = vunpack.c.h.b16 %v93
    %v394 = vunpack.c.l.b16 %v94
    %v395 = vunpack.c.h.b16 %v94
    %v396 = vunpack.c.l.b16 %v95
    %v397 = vunpack.c.h.b16 %v95
    %v398 = vunpack.c.l.b16 %v96
    %v399 = vunpack.c.h.b16 %v96
    %v400 = vunpack.c.l.b16 %v97
    %v401 = vunpack.c.h.b16 %v97
    %v402 = vunpack.c.l.b16 %v98
    %v403 = vunpack.c.h.b16 %v98
    %v404 = vunpack.c.l.b16 %v99
    %v405 = vunpack.c.h.b16 %v99
    %v406 = vunpack.c.l.b16 %v100
    %v407 = vunpack.c.h.b16 %v100
    %v408 = vunpack.c.l.b16 %v101
    %v409 = vunpack.c.h.b16 %v101
    %v410 = vunpack.c.l.b16 %v102
    %v411 = vunpack.c.h.b16 %v102
    %v412 = vunpack.c.l.b16 %v103
    %v413 = vunpack.c.h.b16 %v103
    %v414 = vunpack.c.l.b16 %v104
    %v415 = vunpack.c.h.b16 %v104
    %v416 = vunpack.c.l.b16 %v105
    %v417 = vunpack.c.h.b16 %v105
    %v418 = vunpack.c.l.b16 %v106
    %v419 = vunpack.c.h.b16 %v106
    %v420 = vunpack.c.l.b16 %v107
    %v421 = vunpack.c.h.b16 %v107
    %v422 = vunpack.c.l.b16 %v108
    %v423 = vunpack.c.h.b16 %v108
    %v424 = vunpack.c.l.b16 %v109
    %v425 = vunpack.c.h.b16 %v109
    %v426 = vunpack.c.l.b16 %v110
    %v427 = vunpack.c.h.b16 %v110
    %v428 = vunpack.c.l.b16 %v111
    %v429 = vunpack.c.h.b16 %v111
    %v430 = vunpack.c.l.b16 %v112
    %v431 = vunpack.c.h.b16 %v112
    %v432 = vunpack.c.l.b16 %v113
    %v433 = vunpack.c.h.b16 %v113
    %v434 = vunpack.c.l.b16 %v114
    %v435 = vunpack.c.h.b16 %v114
    %v436 = vunpack.c.l.b16 %v115
    %v437 = vunpack.c.h.b16 %v115
    %v438 = vunpack.c.l.b16 %v116
    %v439 = vunpack.c.h.b16 %v116
    %v440 = vunpack.c.l.b16 %v117
    %v441 = vunpack.c.h.b16 %v117
    %v442 = vunpack.c.l.b16 %v118
    %v443 = vunpack.c.h.b16 %v118
    %v444 = vunpack.c.l.b16 %v119
    %v445 = vunpack.c.h.b16 %v119
    %v446 = vunpack.c.l.b16 %v120
    %v447 = vunpack.c.h.b16 %v120
    %v448 = vunpack.c.l.b16 %v121
    %v449 = vunpack.c.h.b16 %v121
    %v450 = vunpack.c.l.b16 %v122
    %v451 = vunpack.c.h.b16 %v122
    %v452 = vunpack.c.l.b16 %v123
    %v453 = vunpack.c.h.b16 %v123
    %v454 = vunpack.c.l.b16 %v124
    %v455 = vunpack.c.h.b16 %v124
    %v456 = vunpack.c.l.b16 %v125
    %v457 = vunpack.c.h.b16 %v125
    %v458 = vunpack.c.l.b16 %v126
    %v459 = vunpack.c.h.b16 %v126
    %v460 = vunpack.c.l.b16 %v127
    %v461 = vunpack.c.h.b16 %v127
    %v462 = vunpack.c.l.b16 %v128
    %v463 = vunpack.c.h.b16 %v128
    %v464 = vunpack.c.l.b16 %v129
    %v465 = vunpack.c.h.b16 %v129
    %v466 = vpack.c.b16 %v268, %v266
    %v467 = vpack.c.b16 %v269, %v267
    %v468 = vpack.c.b16 %v272, %v270
    %v469 = vpack.c.b16 %v273, %v271
    %v470 = vpack.c.b16 %v276, %v274
    %v471 = vpack.c.b16 %v277, %v275
    %v472 = vpack.c.b16 %v280, %v278
    %v473 = vpack.c.b16 %v281, %v279
    %v474 = vpack.c.b16 %v284, %v282
    %v475 = vpack.c.b16 %v285, %v283
    %v476 = vpack.c.b16 %v288, %v286
    %v477 = vpack.c.b16 %v289, %v287
    %v478 = vpack.c.b16 %v292, %v290
    %v479 = vpack.c.b16 %v293, %v291
    %v480 = vpack.c.b16 %v296, %v294
    %v481 = vpack.c.b16 %v297, %v295
    %v482 = vpack.c.b16 %v300, %v298
    %v483 = vpack.c.b16 %v301, %v299
    %v484 = vpack.c.b16 %v304, %v302
    %v485 = vpack.c.b16 %v305, %v303
    %v486 = vpack.c.b16 %v308, %v306
    %v487 = vpack.c.b16 %v309, %v307
    %v488 = vpack.c.b16 %v312, %v310
    %v489 = vpack.c.b16 %v313, %v311
    %v490 = vpack.c.b16 %v316, %v314
    %v491 = vpack.c.b16 %v317, %v315
    %v492 = vpack.c.b16 %v320, %v318
    %v493 = vpack.c.b16 %v321, %v319
    %v494 = vpack.c.b16 %v324, %v322
    %v495 = vpack.c.b16 %v325, %v323
    %v496 = vpack.c.b16 %v328, %v326
    %v497 = vpack.c.b16 %v329, %v327
    %v498 = vpack.c.b16 %v332, %v330
    %v499 = vpack.c.b16 %v333, %v331
    %v500 = vpack.c.b16 %v336, %v334
    %v501 = vpack.c.b16 %v337, %v335
    %v502 = vpack.c.b16 %v340, %v338
    %v503 = vpack.c.b16 %v341, %v339
    %v504 = vpack.c.b16 %v344, %v342
    %v505 = vpack.c.b16 %v345, %v343
    %v506 = vpack.c.b16 %v348, %v346
    %v507 = vpack.c.b16 %v349, %v347
    %v508 = vpack.c.b16 %v352, %v350
    %v509 = vpack.c.b16 %v353, %v351
    %v510 = vpack.c.b16 %v356, %v354
    %v511 = vpack.c.b16 %v357, %v355
    %v512 = vpack.c.b16 %v360, %v358
    %v513 = vpack.c.b16 %v361, %v359
    %v514 = vpack.c.b16 %v364, %v362
    %v515 = vpack.c.b16 %v365, %v363
    %v516 = vpack.c.b16 %v368, %v366
    %v517 = vpack.c.b16 %v369, %v367
    %v518 = vpack.c.b16 %v372, %v370
    %v519 = vpack.c.b16 %v373, %v371
    %v520 = vpack.c.b16 %v376, %v374
    %v521 = vpack.c.b16 %v377, %v375
    %v522 = vpack.c.b16 %v380, %v378
    %v523 = vpack.c.b16 %v381, %v379
    %v524 = vpack.c.b16 %v384, %v382
    %v525 = vpack.c.b16 %v385, %v383
    %v526 = vpack.c.b16 %v388, %v386
    %v527 = vpack.c.b16 %v389, %v387
    %v528 = vpack.c.b16 %v392, %v390
    %v529 = vpack.c.b16 %v393, %v391
    %v530 = vpack.c.b16 %v396, %v394
    %v531 = vpack.c.b16 %v397, %v395
    %v532 = vpack.c.b16 %v400, %v398
    %v533 = vpack.c.b16 %v401, %v399
    %v534 = vpack.c.b16 %v404, %v402
    %v535 = vpack.c.b16 %v405, %v403
    %v536 = vpack.c.b16 %v408, %v406
    %v537 = vpack.c.b16 %v409, %v407
    %v538 = vpack.c.b16 %v412, %v410
    %v539 = vpack.c.b16 %v413, %v411
    %v540 = vpack.c.b16 %v416, %v414
    %v541 = vpack.c.b16 %v417, %v415
    %v542 = vpack.c.b16 %v420, %v418
    %v543 = vpack.c.b16 %v421, %v419
    %v544 = vpack.c.b16 %v424, %v422
    %v545 = vpack.c.b16 %v425, %v423
    %v546 = vpack.c.b16 %v428, %v426
    %v547 = vpack.c.b16 %v429, %v427
    %v548 = vpack.c.b16 %v432, %v430
    %v549 = vpack.c.b16 %v433, %v431
    %v550 = vpack.c.b16 %v436, %v434
    %v551 = vpack.c.b16 %v437, %v435
    %v552 = vpack.c.b16 %v440, %v438
    %v553 = vpack.c.b16 %v441, %v439
    %v554 = vpack.c.b16 %v444, %v442
    %v555 = vpack.c.b16 %v445, %v443
    %v556 = vpack.c.b16 %v448, %v446
    %v557 = vpack.c.b16 %v449, %v447
    %v558 = vpack.c.b16 %v452, %v450
    %v559 = vpack.c.b16 %v453, %v451
    %v560 = vpack.c.b16 %v456, %v454
    %v561 = vpack.c.b16 %v457, %v455
    %v562 = vpack.c.b16 %v460, %v458
    %v563 = vpack.c.b16 %v461, %v459
    %v564 = vpack.c.b16 %v464, %v462
    %v565 = vpack.c.b16 %v465, %v463
    %v698 = vunpack.c.l.b16 %v130
    %v699 = vunpack.c.l.b16 %v131
    %v700 = vunpack.c.l.b16 %v132
    %v701 = vunpack.c.l.b16 %v133
    %v702 = vunpack.c.l.b16 %v134
    %v703 = vunpack.c.l.b16 %v135
    %v704 = vunpack.c.l.b16 %v136
    %v705 = vunpack.c.l.b16 %v137
    %v706 = vunpack.c.l.b16 %v138
    %v707 = vunpack.c.l.b16 %v139
    %v708 = vunpack.c.l.b16 %v140
    %v709 = vunpack.c.l.b16 %v141
    %v710 = vunpack.c.l.b16 %v142
    %v711 = vunpack.c.l.b16 %v143
    %v712 = vunpack.c.l.b16 %v144
    %v713 = vunpack.c.l.b16 %v145
    %v714 = vunpack.c.l.b16 %v146
    %v715 = vunpack.c.l.b16 %v147
    %v716 = vunpack.c.l.b16 %v148
    %v717 = vunpack.c.l.b16 %v149
    %v718 = vunpack.c.l.b16 %v150
    %v719 = vunpack.c.l.b16 %v151
    %v720 = vunpack.c.l.b16 %v152
    %v721 = vunpack.c.l.b16 %v153
    %v722 = vunpack.c.l.b16 %v154
    %v723 = vunpack.c.l.b16 %v155
    %v724 = vunpack.c.l.b16 %v156
    %v725 = vunpack.c.l.b16 %v157
    %v726 = vunpack.c.l.b16 %v158
    %v727 = vunpack.c.l.b16 %v159
    %v728 = vunpack.c.l.b16 %v160
    %v729 = vunpack.c.l.b16 %v161
    %v730 = vpack.c.b16 %v699, %v698
    %v731 = vpack.c.b16 %v701, %v700
    %v732 = vpack.c.b16 %v703, %v702
    %v733 = vpack.c.b16 %v705, %v704
    %v734 = vpack.c.b16 %v707, %v706
    %v735 = vpack.c.b16 %v709, %v708
    %v736 = vpack.c.b16 %v711, %v710
    %v737 = vpack.c.b16 %v713, %v712
    %v738 = vpack.c.b16 %v715, %v714
    %v739 = vpack.c.b16 %v717, %v716
    %v740 = vpack.c.b16 %v719, %v718
    %v741 = vpack.c.b16 %v721, %v720
    %v742 = vpack.c.b16 %v723, %v722
    %v743 = vpack.c.b16 %v725, %v724
    %v744 = vpack.c.b16 %v727, %v726
    %v745 = vpack.c.b16 %v729, %v728
    %762 = vmatpush.bf16.msra.mxu0 %v737
    %763 = vmatpush.bf16.msra.mxu0 %v736
    %764 = vmatpush.bf16.msra.mxu0 %v735
    %765 = vmatpush.bf16.msra.mxu0 %v734
    %766 = vmatpush.bf16.msra.mxu0 %v733
    %767 = vmatpush.bf16.msra.mxu0 %v732
    %768 = vmatpush.bf16.msra.mxu0 %v731
    %769 = vmatpush.bf16.msra.mxu0 %v730
    %770 = vmatmul.bf16.gmra.mxu0 %v466
    %v771 = vpop.f32.mrf.mxu0
    %v772 = vadd.f32 %v164, %v771
    %v773 = vpop.f32.mrf.mxu0
    %v774 = vadd.f32 %v164, %v773
    %775 = vmatmul.bf16.gmra.mxu0 %v468
    %v776 = vpop.f32.mrf.mxu0
    %v777 = vadd.f32 %v164, %v776
    %v778 = vpop.f32.mrf.mxu0
    %v779 = vadd.f32 %v164, %v778
    %780 = vmatmul.bf16.gmra.mxu0 %v470
    %v781 = vpop.f32.mrf.mxu0
    %v782 = vadd.f32 %v164, %v781
    %v783 = vpop.f32.mrf.mxu0
    %v784 = vadd.f32 %v164, %v783
    %785 = vmatmul.bf16.gmra.mxu0 %v472
    %v786 = vpop.f32.mrf.mxu0
    %v787 = vadd.f32 %v164, %v786
    %v788 = vpop.f32.mrf.mxu0
    %v789 = vadd.f32 %v164, %v788
    %790 = vmatmul.bf16.gmra.mxu0 %v474
    %v791 = vpop.f32.mrf.mxu0
    %v792 = vadd.f32 %v164, %v791
    %v793 = vpop.f32.mrf.mxu0
    %v794 = vadd.f32 %v164, %v793
    %795 = vmatmul.bf16.gmra.mxu0 %v476
    %v796 = vpop.f32.mrf.mxu0
    %v797 = vadd.f32 %v164, %v796
    %v798 = vpop.f32.mrf.mxu0
    %v799 = vadd.f32 %v164, %v798
    %800 = vmatmul.bf16.gmra.mxu0 %v478
    %v801 = vpop.f32.mrf.mxu0
    %v802 = vadd.f32 %v164, %v801
    %v803 = vpop.f32.mrf.mxu0
    %v804 = vadd.f32 %v164, %v803
    %805 = vmatmul.bf16.gmra.mxu0 %v480
    %v806 = vpop.f32.mrf.mxu0
    %v807 = vadd.f32 %v164, %v806
    %v808 = vpop.f32.mrf.mxu0
    %v809 = vadd.f32 %v164, %v808
    %810 = vmatmul.bf16.gmra.mxu0 %v482
    %v811 = vpop.f32.mrf.mxu0
    %v812 = vadd.f32 %v164, %v811
    %v813 = vpop.f32.mrf.mxu0
    %v814 = vadd.f32 %v164, %v813
    %815 = vmatmul.bf16.gmra.mxu0 %v484
    %v816 = vpop.f32.mrf.mxu0
    %v817 = vadd.f32 %v164, %v816
    %v818 = vpop.f32.mrf.mxu0
    %v819 = vadd.f32 %v164, %v818
    %820 = vmatmul.bf16.gmra.mxu0 %v486
    %v821 = vpop.f32.mrf.mxu0
    %v822 = vadd.f32 %v164, %v821
    %v823 = vpop.f32.mrf.mxu0
    %v824 = vadd.f32 %v164, %v823
    %825 = vmatmul.bf16.gmra.mxu0 %v488
    %v826 = vpop.f32.mrf.mxu0
    %v827 = vadd.f32 %v164, %v826
    %v828 = vpop.f32.mrf.mxu0
    %v829 = vadd.f32 %v164, %v828
    %830 = vmatmul.bf16.gmra.mxu0 %v490
    %v831 = vpop.f32.mrf.mxu0
    %v832 = vadd.f32 %v164, %v831
    %v833 = vpop.f32.mrf.mxu0
    %v834 = vadd.f32 %v164, %v833
    %835 = vmatmul.bf16.gmra.mxu0 %v492
    %v836 = vpop.f32.mrf.mxu0
    %v837 = vadd.f32 %v164, %v836
    %v838 = vpop.f32.mrf.mxu0
    %v839 = vadd.f32 %v164, %v838
    %840 = vmatmul.bf16.gmra.mxu0 %v494
    %v841 = vpop.f32.mrf.mxu0
    %v842 = vadd.f32 %v164, %v841
    %v843 = vpop.f32.mrf.mxu0
    %v844 = vadd.f32 %v164, %v843
    %845 = vmatmul.bf16.gmra.mxu0 %v496
    %v846 = vpop.f32.mrf.mxu0
    %v847 = vadd.f32 %v164, %v846
    %v848 = vpop.f32.mrf.mxu0
    %v849 = vadd.f32 %v164, %v848
    %850 = vmatmul.bf16.gmra.mxu0 %v498
    %v851 = vpop.f32.mrf.mxu0
    %v852 = vadd.f32 %v164, %v851
    %v853 = vpop.f32.mrf.mxu0
    %v854 = vadd.f32 %v164, %v853
    %855 = vmatmul.bf16.gmra.mxu0 %v500
    %v856 = vpop.f32.mrf.mxu0
    %v857 = vadd.f32 %v164, %v856
    %v858 = vpop.f32.mrf.mxu0
    %v859 = vadd.f32 %v164, %v858
    %860 = vmatmul.bf16.gmra.mxu0 %v502
    %v861 = vpop.f32.mrf.mxu0
    %v862 = vadd.f32 %v164, %v861
    %v863 = vpop.f32.mrf.mxu0
    %v864 = vadd.f32 %v164, %v863
    %865 = vmatmul.bf16.gmra.mxu0 %v504
    %v866 = vpop.f32.mrf.mxu0
    %v867 = vadd.f32 %v164, %v866
    %v868 = vpop.f32.mrf.mxu0
    %v869 = vadd.f32 %v164, %v868
    %870 = vmatmul.bf16.gmra.mxu0 %v506
    %v871 = vpop.f32.mrf.mxu0
    %v872 = vadd.f32 %v164, %v871
    %v873 = vpop.f32.mrf.mxu0
    %v874 = vadd.f32 %v164, %v873
    %875 = vmatmul.bf16.gmra.mxu0 %v508
    %v876 = vpop.f32.mrf.mxu0
    %v877 = vadd.f32 %v164, %v876
    %v878 = vpop.f32.mrf.mxu0
    %v879 = vadd.f32 %v164, %v878
    %880 = vmatmul.bf16.gmra.mxu0 %v510
    %v881 = vpop.f32.mrf.mxu0
    %v882 = vadd.f32 %v164, %v881
    %v883 = vpop.f32.mrf.mxu0
    %v884 = vadd.f32 %v164, %v883
    %885 = vmatmul.bf16.gmra.mxu0 %v512
    %v886 = vpop.f32.mrf.mxu0
    %v887 = vadd.f32 %v164, %v886
    %v888 = vpop.f32.mrf.mxu0
    %v889 = vadd.f32 %v164, %v888
    %890 = vmatmul.bf16.gmra.mxu0 %v514
    %v891 = vpop.f32.mrf.mxu0
    %v892 = vadd.f32 %v164, %v891
    %v893 = vpop.f32.mrf.mxu0
    %v894 = vadd.f32 %v164, %v893
    %895 = vmatmul.bf16.gmra.mxu0 %v516
    %v896 = vpop.f32.mrf.mxu0
    %v897 = vadd.f32 %v164, %v896
    %v898 = vpop.f32.mrf.mxu0
    %v899 = vadd.f32 %v164, %v898
    %900 = vmatmul.bf16.gmra.mxu0 %v518
    %v901 = vpop.f32.mrf.mxu0
    %v902 = vadd.f32 %v164, %v901
    %v903 = vpop.f32.mrf.mxu0
    %v904 = vadd.f32 %v164, %v903
    %905 = vmatmul.bf16.gmra.mxu0 %v520
    %v906 = vpop.f32.mrf.mxu0
    %v907 = vadd.f32 %v164, %v906
    %v908 = vpop.f32.mrf.mxu0
    %v909 = vadd.f32 %v164, %v908
    %910 = vmatmul.bf16.gmra.mxu0 %v522
    %v911 = vpop.f32.mrf.mxu0
    %v912 = vadd.f32 %v164, %v911
    %v913 = vpop.f32.mrf.mxu0
    %v914 = vadd.f32 %v164, %v913
    %915 = vmatmul.bf16.gmra.mxu0 %v524
    %v916 = vpop.f32.mrf.mxu0
    %v917 = vadd.f32 %v164, %v916
    %v918 = vpop.f32.mrf.mxu0
    %v919 = vadd.f32 %v164, %v918
    %920 = vmatmul.bf16.gmra.mxu0 %v526
    %v921 = vpop.f32.mrf.mxu0
    %v922 = vadd.f32 %v164, %v921
    %v923 = vpop.f32.mrf.mxu0
    %v924 = vadd.f32 %v164, %v923
    %925 = vmatmul.bf16.gmra.mxu0 %v528
    %v926 = vpop.f32.mrf.mxu0
    %v927 = vadd.f32 %v164, %v926
    %v928 = vpop.f32.mrf.mxu0
    %v929 = vadd.f32 %v164, %v928
    %930 = vmatmul.bf16.gmra.mxu0 %v530
    %v931 = vpop.f32.mrf.mxu0
    %v932 = vadd.f32 %v164, %v931
    %v933 = vpop.f32.mrf.mxu0
    %v934 = vadd.f32 %v164, %v933
    %935 = vmatmul.bf16.gmra.mxu0 %v532
    %v936 = vpop.f32.mrf.mxu0
    %v937 = vadd.f32 %v164, %v936
    %v938 = vpop.f32.mrf.mxu0
    %v939 = vadd.f32 %v164, %v938
    %940 = vmatmul.bf16.gmra.mxu0 %v534
    %v941 = vpop.f32.mrf.mxu0
    %v942 = vadd.f32 %v164, %v941
    %v943 = vpop.f32.mrf.mxu0
    %v944 = vadd.f32 %v164, %v943
    %945 = vmatmul.bf16.gmra.mxu0 %v536
    %v946 = vpop.f32.mrf.mxu0
    %v947 = vadd.f32 %v164, %v946
    %v948 = vpop.f32.mrf.mxu0
    %v949 = vadd.f32 %v164, %v948
    %950 = vmatmul.bf16.gmra.mxu0 %v538
    %v951 = vpop.f32.mrf.mxu0
    %v952 = vadd.f32 %v164, %v951
    %v953 = vpop.f32.mrf.mxu0
    %v954 = vadd.f32 %v164, %v953
    %955 = vmatmul.bf16.gmra.mxu0 %v540
    %v956 = vpop.f32.mrf.mxu0
    %v957 = vadd.f32 %v164, %v956
    %v958 = vpop.f32.mrf.mxu0
    %v959 = vadd.f32 %v164, %v958
    %960 = vmatmul.bf16.gmra.mxu0 %v542
    %v961 = vpop.f32.mrf.mxu0
    %v962 = vadd.f32 %v164, %v961
    %v963 = vpop.f32.mrf.mxu0
    %v964 = vadd.f32 %v164, %v963
    %965 = vmatmul.bf16.gmra.mxu0 %v544
    %v966 = vpop.f32.mrf.mxu0
    %v967 = vadd.f32 %v164, %v966
    %v968 = vpop.f32.mrf.mxu0
    %v969 = vadd.f32 %v164, %v968
    %970 = vmatmul.bf16.gmra.mxu0 %v546
    %v971 = vpop.f32.mrf.mxu0
    %v972 = vadd.f32 %v164, %v971
    %v973 = vpop.f32.mrf.mxu0
    %v974 = vadd.f32 %v164, %v973
    %975 = vmatmul.bf16.gmra.mxu0 %v548
    %v976 = vpop.f32.mrf.mxu0
    %v977 = vadd.f32 %v164, %v976
    %v978 = vpop.f32.mrf.mxu0
    %v979 = vadd.f32 %v164, %v978
    %980 = vmatmul.bf16.gmra.mxu0 %v550
    %v981 = vpop.f32.mrf.mxu0
    %v982 = vadd.f32 %v164, %v981
    %v983 = vpop.f32.mrf.mxu0
    %v984 = vadd.f32 %v164, %v983
    %985 = vmatmul.bf16.gmra.mxu0 %v552
    %v986 = vpop.f32.mrf.mxu0
    %v987 = vadd.f32 %v164, %v986
    %v988 = vpop.f32.mrf.mxu0
    %v989 = vadd.f32 %v164, %v988
    %990 = vmatmul.bf16.gmra.mxu0 %v554
    %v991 = vpop.f32.mrf.mxu0
    %v992 = vadd.f32 %v164, %v991
    %v993 = vpop.f32.mrf.mxu0
    %v994 = vadd.f32 %v164, %v993
    %995 = vmatmul.bf16.gmra.mxu0 %v556
    %v996 = vpop.f32.mrf.mxu0
    %v997 = vadd.f32 %v164, %v996
    %v998 = vpop.f32.mrf.mxu0
    %v999 = vadd.f32 %v164, %v998
    %1000 = vmatmul.bf16.gmra.mxu0 %v558
    %v1001 = vpop.f32.mrf.mxu0
    %v1002 = vadd.f32 %v164, %v1001
    %v1003 = vpop.f32.mrf.mxu0
    %v1004 = vadd.f32 %v164, %v1003
    %1005 = vmatmul.bf16.gmra.mxu0 %v560
    %v1006 = vpop.f32.mrf.mxu0
    %v1007 = vadd.f32 %v164, %v1006
    %v1008 = vpop.f32.mrf.mxu0
    %v1009 = vadd.f32 %v164, %v1008
    %1010 = vmatmul.bf16.gmra.mxu0 %v562
    %v1011 = vpop.f32.mrf.mxu0
    %v1012 = vadd.f32 %v164, %v1011
    %v1013 = vpop.f32.mrf.mxu0
    %v1014 = vadd.f32 %v164, %v1013
    %1015 = vmatmul.bf16.gmra.mxu0 %v564
    %v1016 = vpop.f32.mrf.mxu0
    %v1017 = vadd.f32 %v164, %v1016
    %v1018 = vpop.f32.mrf.mxu0
    %v1019 = vadd.f32 %v164, %v1018
    %1020 = vdwg.mxu0
    %1021 = vmatpush.bf16.msra.mxu0 %v745
    %1022 = vmatpush.bf16.msra.mxu0 %v744
    %1023 = vmatpush.bf16.msra.mxu0 %v743
    %1024 = vmatpush.bf16.msra.mxu0 %v742
    %1025 = vmatpush.bf16.msra.mxu0 %v741
    %1026 = vmatpush.bf16.msra.mxu0 %v740
    %1027 = vmatpush.bf16.msra.mxu0 %v739
    %1028 = vmatpush.bf16.msra.mxu0 %v738
    %1029 = vmatmul.bf16.gmra.mxu0 %v467
    %v1030 = vpop.f32.mrf.mxu0
    %v1031 = vadd.f32 %v772, %v1030
    %v1032 = vpop.f32.mrf.mxu0
    %v1033 = vadd.f32 %v774, %v1032
    %1034 = vmatmul.bf16.gmra.mxu0 %v469
    %v1035 = vpop.f32.mrf.mxu0
    %v1036 = vadd.f32 %v777, %v1035
    %v1037 = vpop.f32.mrf.mxu0
    %v1038 = vadd.f32 %v779, %v1037
    %1039 = vmatmul.bf16.gmra.mxu0 %v471
    %v1040 = vpop.f32.mrf.mxu0
    %v1041 = vadd.f32 %v782, %v1040
    %v1042 = vpop.f32.mrf.mxu0
    %v1043 = vadd.f32 %v784, %v1042
    %1044 = vmatmul.bf16.gmra.mxu0 %v473
    %v1045 = vpop.f32.mrf.mxu0
    %v1046 = vadd.f32 %v787, %v1045
    %v1047 = vpop.f32.mrf.mxu0
    %v1048 = vadd.f32 %v789, %v1047
    %1049 = vmatmul.bf16.gmra.mxu0 %v475
    %v1050 = vpop.f32.mrf.mxu0
    %v1051 = vadd.f32 %v792, %v1050
    %v1052 = vpop.f32.mrf.mxu0
    %v1053 = vadd.f32 %v794, %v1052
    %1054 = vmatmul.bf16.gmra.mxu0 %v477
    %v1055 = vpop.f32.mrf.mxu0
    %v1056 = vadd.f32 %v797, %v1055
    %v1057 = vpop.f32.mrf.mxu0
    %v1058 = vadd.f32 %v799, %v1057
    %1059 = vmatmul.bf16.gmra.mxu0 %v479
    %v1060 = vpop.f32.mrf.mxu0
    %v1061 = vadd.f32 %v802, %v1060
    %v1062 = vpop.f32.mrf.mxu0
    %v1063 = vadd.f32 %v804, %v1062
    %1064 = vmatmul.bf16.gmra.mxu0 %v481
    %v1065 = vpop.f32.mrf.mxu0
    %v1066 = vadd.f32 %v807, %v1065
    %v1067 = vpop.f32.mrf.mxu0
    %v1068 = vadd.f32 %v809, %v1067
    %1069 = vmatmul.bf16.gmra.mxu0 %v483
    %v1070 = vpop.f32.mrf.mxu0
    %v1071 = vadd.f32 %v812, %v1070
    %v1072 = vpop.f32.mrf.mxu0
    %v1073 = vadd.f32 %v814, %v1072
    %1074 = vmatmul.bf16.gmra.mxu0 %v485
    %v1075 = vpop.f32.mrf.mxu0
    %v1076 = vadd.f32 %v817, %v1075
    %v1077 = vpop.f32.mrf.mxu0
    %v1078 = vadd.f32 %v819, %v1077
    %1079 = vmatmul.bf16.gmra.mxu0 %v487
    %v1080 = vpop.f32.mrf.mxu0
    %v1081 = vadd.f32 %v822, %v1080
    %v1082 = vpop.f32.mrf.mxu0
    %v1083 = vadd.f32 %v824, %v1082
    %1084 = vmatmul.bf16.gmra.mxu0 %v489
    %v1085 = vpop.f32.mrf.mxu0
    %v1086 = vadd.f32 %v827, %v1085
    %v1087 = vpop.f32.mrf.mxu0
    %v1088 = vadd.f32 %v829, %v1087
    %1089 = vmatmul.bf16.gmra.mxu0 %v491
    %v1090 = vpop.f32.mrf.mxu0
    %v1091 = vadd.f32 %v832, %v1090
    %v1092 = vpop.f32.mrf.mxu0
    %v1093 = vadd.f32 %v834, %v1092
    %1094 = vmatmul.bf16.gmra.mxu0 %v493
    %v1095 = vpop.f32.mrf.mxu0
    %v1096 = vadd.f32 %v837, %v1095
    %v1097 = vpop.f32.mrf.mxu0
    %v1098 = vadd.f32 %v839, %v1097
    %1099 = vmatmul.bf16.gmra.mxu0 %v495
    %v1100 = vpop.f32.mrf.mxu0
    %v1101 = vadd.f32 %v842, %v1100
    %v1102 = vpop.f32.mrf.mxu0
    %v1103 = vadd.f32 %v844, %v1102
    %1104 = vmatmul.bf16.gmra.mxu0 %v497
    %v1105 = vpop.f32.mrf.mxu0
    %v1106 = vadd.f32 %v847, %v1105
    %v1107 = vpop.f32.mrf.mxu0
    %v1108 = vadd.f32 %v849, %v1107
    %1109 = vmatmul.bf16.gmra.mxu0 %v499
    %v1110 = vpop.f32.mrf.mxu0
    %v1111 = vadd.f32 %v852, %v1110
    %v1112 = vpop.f32.mrf.mxu0
    %v1113 = vadd.f32 %v854, %v1112
    %1114 = vmatmul.bf16.gmra.mxu0 %v501
    %v1115 = vpop.f32.mrf.mxu0
    %v1116 = vadd.f32 %v857, %v1115
    %v1117 = vpop.f32.mrf.mxu0
    %v1118 = vadd.f32 %v859, %v1117
    %1119 = vmatmul.bf16.gmra.mxu0 %v503
    %v1120 = vpop.f32.mrf.mxu0
    %v1121 = vadd.f32 %v862, %v1120
    %v1122 = vpop.f32.mrf.mxu0
    %v1123 = vadd.f32 %v864, %v1122
    %1124 = vmatmul.bf16.gmra.mxu0 %v505
    %v1125 = vpop.f32.mrf.mxu0
    %v1126 = vadd.f32 %v867, %v1125
    %v1127 = vpop.f32.mrf.mxu0
    %v1128 = vadd.f32 %v869, %v1127
    %1129 = vmatmul.bf16.gmra.mxu0 %v507
    %v1130 = vpop.f32.mrf.mxu0
    %v1131 = vadd.f32 %v872, %v1130
    %v1132 = vpop.f32.mrf.mxu0
    %v1133 = vadd.f32 %v874, %v1132
    %1134 = vmatmul.bf16.gmra.mxu0 %v509
    %v1135 = vpop.f32.mrf.mxu0
    %v1136 = vadd.f32 %v877, %v1135
    %v1137 = vpop.f32.mrf.mxu0
    %v1138 = vadd.f32 %v879, %v1137
    %1139 = vmatmul.bf16.gmra.mxu0 %v511
    %v1140 = vpop.f32.mrf.mxu0
    %v1141 = vadd.f32 %v882, %v1140
    %v1142 = vpop.f32.mrf.mxu0
    %v1143 = vadd.f32 %v884, %v1142
    %1144 = vmatmul.bf16.gmra.mxu0 %v513
    %v1145 = vpop.f32.mrf.mxu0
    %v1146 = vadd.f32 %v887, %v1145
    %v1147 = vpop.f32.mrf.mxu0
    %v1148 = vadd.f32 %v889, %v1147
    %1149 = vmatmul.bf16.gmra.mxu0 %v515
    %v1150 = vpop.f32.mrf.mxu0
    %v1151 = vadd.f32 %v892, %v1150
    %v1152 = vpop.f32.mrf.mxu0
    %v1153 = vadd.f32 %v894, %v1152
    %1154 = vmatmul.bf16.gmra.mxu0 %v517
    %v1155 = vpop.f32.mrf.mxu0
    %v1156 = vadd.f32 %v897, %v1155
    %v1157 = vpop.f32.mrf.mxu0
    %v1158 = vadd.f32 %v899, %v1157
    %1159 = vmatmul.bf16.gmra.mxu0 %v519
    %v1160 = vpop.f32.mrf.mxu0
    %v1161 = vadd.f32 %v902, %v1160
    %v1162 = vpop.f32.mrf.mxu0
    %v1163 = vadd.f32 %v904, %v1162
    %1164 = vmatmul.bf16.gmra.mxu0 %v521
    %v1165 = vpop.f32.mrf.mxu0
    %v1166 = vadd.f32 %v907, %v1165
    %v1167 = vpop.f32.mrf.mxu0
    %v1168 = vadd.f32 %v909, %v1167
    %1169 = vmatmul.bf16.gmra.mxu0 %v523
    %v1170 = vpop.f32.mrf.mxu0
    %v1171 = vadd.f32 %v912, %v1170
    %v1172 = vpop.f32.mrf.mxu0
    %v1173 = vadd.f32 %v914, %v1172
    %1174 = vmatmul.bf16.gmra.mxu0 %v525
    %v1175 = vpop.f32.mrf.mxu0
    %v1176 = vadd.f32 %v917, %v1175
    %v1177 = vpop.f32.mrf.mxu0
    %v1178 = vadd.f32 %v919, %v1177
    %1179 = vmatmul.bf16.gmra.mxu0 %v527
    %v1180 = vpop.f32.mrf.mxu0
    %v1181 = vadd.f32 %v922, %v1180
    %v1182 = vpop.f32.mrf.mxu0
    %v1183 = vadd.f32 %v924, %v1182
    %1184 = vmatmul.bf16.gmra.mxu0 %v529
    %v1185 = vpop.f32.mrf.mxu0
    %v1186 = vadd.f32 %v927, %v1185
    %v1187 = vpop.f32.mrf.mxu0
    %v1188 = vadd.f32 %v929, %v1187
    %1189 = vmatmul.bf16.gmra.mxu0 %v531
    %v1190 = vpop.f32.mrf.mxu0
    %v1191 = vadd.f32 %v932, %v1190
    %v1192 = vpop.f32.mrf.mxu0
    %v1193 = vadd.f32 %v934, %v1192
    %1194 = vmatmul.bf16.gmra.mxu0 %v533
    %v1195 = vpop.f32.mrf.mxu0
    %v1196 = vadd.f32 %v937, %v1195
    %v1197 = vpop.f32.mrf.mxu0
    %v1198 = vadd.f32 %v939, %v1197
    %1199 = vmatmul.bf16.gmra.mxu0 %v535
    %v1200 = vpop.f32.mrf.mxu0
    %v1201 = vadd.f32 %v942, %v1200
    %v1202 = vpop.f32.mrf.mxu0
    %v1203 = vadd.f32 %v944, %v1202
    %1204 = vmatmul.bf16.gmra.mxu0 %v537
    %v1205 = vpop.f32.mrf.mxu0
    %v1206 = vadd.f32 %v947, %v1205
    %v1207 = vpop.f32.mrf.mxu0
    %v1208 = vadd.f32 %v949, %v1207
    %1209 = vmatmul.bf16.gmra.mxu0 %v539
    %v1210 = vpop.f32.mrf.mxu0
    %v1211 = vadd.f32 %v952, %v1210
    %v1212 = vpop.f32.mrf.mxu0
    %v1213 = vadd.f32 %v954, %v1212
    %1214 = vmatmul.bf16.gmra.mxu0 %v541
    %v1215 = vpop.f32.mrf.mxu0
    %v1216 = vadd.f32 %v957, %v1215
    %v1217 = vpop.f32.mrf.mxu0
    %v1218 = vadd.f32 %v959, %v1217
    %1219 = vmatmul.bf16.gmra.mxu0 %v543
    %v1220 = vpop.f32.mrf.mxu0
    %v1221 = vadd.f32 %v962, %v1220
    %v1222 = vpop.f32.mrf.mxu0
    %v1223 = vadd.f32 %v964, %v1222
    %1224 = vmatmul.bf16.gmra.mxu0 %v545
    %v1225 = vpop.f32.mrf.mxu0
    %v1226 = vadd.f32 %v967, %v1225
    %v1227 = vpop.f32.mrf.mxu0
    %v1228 = vadd.f32 %v969, %v1227
    %1229 = vmatmul.bf16.gmra.mxu0 %v547
    %v1230 = vpop.f32.mrf.mxu0
    %v1231 = vadd.f32 %v972, %v1230
    %v1232 = vpop.f32.mrf.mxu0
    %v1233 = vadd.f32 %v974, %v1232
    %1234 = vmatmul.bf16.gmra.mxu0 %v549
    %v1235 = vpop.f32.mrf.mxu0
    %v1236 = vadd.f32 %v977, %v1235
    %v1237 = vpop.f32.mrf.mxu0
    %v1238 = vadd.f32 %v979, %v1237
    %1239 = vmatmul.bf16.gmra.mxu0 %v551
    %v1240 = vpop.f32.mrf.mxu0
    %v1241 = vadd.f32 %v982, %v1240
    %v1242 = vpop.f32.mrf.mxu0
    %v1243 = vadd.f32 %v984, %v1242
    %1244 = vmatmul.bf16.gmra.mxu0 %v553
    %v1245 = vpop.f32.mrf.mxu0
    %v1246 = vadd.f32 %v987, %v1245
    %v1247 = vpop.f32.mrf.mxu0
    %v1248 = vadd.f32 %v989, %v1247
    %1249 = vmatmul.bf16.gmra.mxu0 %v555
    %v1250 = vpop.f32.mrf.mxu0
    %v1251 = vadd.f32 %v992, %v1250
    %v1252 = vpop.f32.mrf.mxu0
    %v1253 = vadd.f32 %v994, %v1252
    %1254 = vmatmul.bf16.gmra.mxu0 %v557
    %v1255 = vpop.f32.mrf.mxu0
    %v1256 = vadd.f32 %v997, %v1255
    %v1257 = vpop.f32.mrf.mxu0
    %v1258 = vadd.f32 %v999, %v1257
    %1259 = vmatmul.bf16.gmra.mxu0 %v559
    %v1260 = vpop.f32.mrf.mxu0
    %v1261 = vadd.f32 %v1002, %v1260
    %v1262 = vpop.f32.mrf.mxu0
    %v1263 = vadd.f32 %v1004, %v1262
    %1264 = vmatmul.bf16.gmra.mxu0 %v561
    %v1265 = vpop.f32.mrf.mxu0
    %v1266 = vadd.f32 %v1007, %v1265
    %v1267 = vpop.f32.mrf.mxu0
    %v1268 = vadd.f32 %v1009, %v1267
    %1269 = vmatmul.bf16.gmra.mxu0 %v563
    %v1270 = vpop.f32.mrf.mxu0
    %v1271 = vadd.f32 %v1012, %v1270
    %v1272 = vpop.f32.mrf.mxu0
    %v1273 = vadd.f32 %v1014, %v1272
    %1274 = vmatmul.bf16.gmra.mxu0 %v565
    %v1275 = vpop.f32.mrf.mxu0
    %v1276 = vadd.f32 %v1017, %v1275
    %v1277 = vpop.f32.mrf.mxu0
    %v1278 = vadd.f32 %v1019, %v1277
    %1279 = vdwg.mxu0
    %v1280 = vmax.f32 %v1031, 0.0
    %v1281 = vmax.f32 %v1033, 0.0
    %v1282 = vmax.f32 %v1036, 0.0
    %v1283 = vmax.f32 %v1038, 0.0
    %v1284 = vmax.f32 %v1041, 0.0
    %v1285 = vmax.f32 %v1043, 0.0
    %v1286 = vmax.f32 %v1046, 0.0
    %v1287 = vmax.f32 %v1048, 0.0
    %v1288 = vmax.f32 %v1051, 0.0
    %v1289 = vmax.f32 %v1053, 0.0
    %v1290 = vmax.f32 %v1056, 0.0
    %v1291 = vmax.f32 %v1058, 0.0
    %v1292 = vmax.f32 %v1061, 0.0
    %v1293 = vmax.f32 %v1063, 0.0
    %v1294 = vmax.f32 %v1066, 0.0
    %v1295 = vmax.f32 %v1068, 0.0
    %v1296 = vmax.f32 %v1071, 0.0
    %v1297 = vmax.f32 %v1073, 0.0
    %v1298 = vmax.f32 %v1076, 0.0
    %v1299 = vmax.f32 %v1078, 0.0
    %v1300 = vmax.f32 %v1081, 0.0
    %v1301 = vmax.f32 %v1083, 0.0
    %v1302 = vmax.f32 %v1086, 0.0
    %v1303 = vmax.f32 %v1088, 0.0
    %v1304 = vmax.f32 %v1091, 0.0
    %v1305 = vmax.f32 %v1093, 0.0
    %v1306 = vmax.f32 %v1096, 0.0
    %v1307 = vmax.f32 %v1098, 0.0
    %v1308 = vmax.f32 %v1101, 0.0
    %v1309 = vmax.f32 %v1103, 0.0
    %v1310 = vmax.f32 %v1106, 0.0
    %v1311 = vmax.f32 %v1108, 0.0
    %v1312 = vmax.f32 %v1111, 0.0
    %v1313 = vmax.f32 %v1113, 0.0
    %v1314 = vmax.f32 %v1116, 0.0
    %v1315 = vmax.f32 %v1118, 0.0
    %v1316 = vmax.f32 %v1121, 0.0
    %v1317 = vmax.f32 %v1123, 0.0
    %v1318 = vmax.f32 %v1126, 0.0
    %v1319 = vmax.f32 %v1128, 0.0
    %v1320 = vmax.f32 %v1131, 0.0
    %v1321 = vmax.f32 %v1133, 0.0
    %v1322 = vmax.f32 %v1136, 0.0
    %v1323 = vmax.f32 %v1138, 0.0
    %v1324 = vmax.f32 %v1141, 0.0
    %v1325 = vmax.f32 %v1143, 0.0
    %v1326 = vmax.f32 %v1146, 0.0
    %v1327 = vmax.f32 %v1148, 0.0
    %v1328 = vmax.f32 %v1151, 0.0
    %v1329 = vmax.f32 %v1153, 0.0
    %v1330 = vmax.f32 %v1156, 0.0
    %v1331 = vmax.f32 %v1158, 0.0
    %v1332 = vmax.f32 %v1161, 0.0
    %v1333 = vmax.f32 %v1163, 0.0
    %v1334 = vmax.f32 %v1166, 0.0
    %v1335 = vmax.f32 %v1168, 0.0
    %v1336 = vmax.f32 %v1171, 0.0
    %v1337 = vmax.f32 %v1173, 0.0
    %v1338 = vmax.f32 %v1176, 0.0
    %v1339 = vmax.f32 %v1178, 0.0
    %v1340 = vmax.f32 %v1181, 0.0
    %v1341 = vmax.f32 %v1183, 0.0
    %v1342 = vmax.f32 %v1186, 0.0
    %v1343 = vmax.f32 %v1188, 0.0
    %v1344 = vmax.f32 %v1191, 0.0
    %v1345 = vmax.f32 %v1193, 0.0
    %v1346 = vmax.f32 %v1196, 0.0
    %v1347 = vmax.f32 %v1198, 0.0
    %v1348 = vmax.f32 %v1201, 0.0
    %v1349 = vmax.f32 %v1203, 0.0
    %v1350 = vmax.f32 %v1206, 0.0
    %v1351 = vmax.f32 %v1208, 0.0
    %v1352 = vmax.f32 %v1211, 0.0
    %v1353 = vmax.f32 %v1213, 0.0
    %v1354 = vmax.f32 %v1216, 0.0
    %v1355 = vmax.f32 %v1218, 0.0
    %v1356 = vmax.f32 %v1221, 0.0
    %v1357 = vmax.f32 %v1223, 0.0
    %v1358 = vmax.f32 %v1226, 0.0
    %v1359 = vmax.f32 %v1228, 0.0
    %v1360 = vmax.f32 %v1231, 0.0
    %v1361 = vmax.f32 %v1233, 0.0
    %v1362 = vmax.f32 %v1236, 0.0
    %v1363 = vmax.f32 %v1238, 0.0
    %v1364 = vmax.f32 %v1241, 0.0
    %v1365 = vmax.f32 %v1243, 0.0
    %v1366 = vmax.f32 %v1246, 0.0
    %v1367 = vmax.f32 %v1248, 0.0
    %v1368 = vmax.f32 %v1251, 0.0
    %v1369 = vmax.f32 %v1253, 0.0
    %v1370 = vmax.f32 %v1256, 0.0
    %v1371 = vmax.f32 %v1258, 0.0
    %v1372 = vmax.f32 %v1261, 0.0
    %v1373 = vmax.f32 %v1263, 0.0
    %v1374 = vmax.f32 %v1266, 0.0
    %v1375 = vmax.f32 %v1268, 0.0
    %v1376 = vmax.f32 %v1271, 0.0
    %v1377 = vmax.f32 %v1273, 0.0
    %v1378 = vmax.f32 %v1276, 0.0
    %v1379 = vmax.f32 %v1278, 0.0
    %v1380 = vpack.c.bf16 %v1280, %v1280
    %v1381 = vpack.c.bf16 %v1281, %v1281
    %v1382 = vpack.c.bf16 %v1282, %v1282
    %v1383 = vpack.c.bf16 %v1283, %v1283
    %v1384 = vpack.c.bf16 %v1284, %v1284
    %v1385 = vpack.c.bf16 %v1285, %v1285
    %v1386 = vpack.c.bf16 %v1286, %v1286
    %v1387 = vpack.c.bf16 %v1287, %v1287
    %v1388 = vpack.c.bf16 %v1288, %v1288
    %v1389 = vpack.c.bf16 %v1289, %v1289
    %v1390 = vpack.c.bf16 %v1290, %v1290
    %v1391 = vpack.c.bf16 %v1291, %v1291
    %v1392 = vpack.c.bf16 %v1292, %v1292
    %v1393 = vpack.c.bf16 %v1293, %v1293
    %v1394 = vpack.c.bf16 %v1294, %v1294
    %v1395 = vpack.c.bf16 %v1295, %v1295
    %v1396 = vpack.c.bf16 %v1296, %v1296
    %v1397 = vpack.c.bf16 %v1297, %v1297
    %v1398 = vpack.c.bf16 %v1298, %v1298
    %v1399 = vpack.c.bf16 %v1299, %v1299
    %v1400 = vpack.c.bf16 %v1300, %v1300
    %v1401 = vpack.c.bf16 %v1301, %v1301
    %v1402 = vpack.c.bf16 %v1302, %v1302
    %v1403 = vpack.c.bf16 %v1303, %v1303
    %v1404 = vpack.c.bf16 %v1304, %v1304
    %v1405 = vpack.c.bf16 %v1305, %v1305
    %v1406 = vpack.c.bf16 %v1306, %v1306
    %v1407 = vpack.c.bf16 %v1307, %v1307
    %v1408 = vpack.c.bf16 %v1308, %v1308
    %v1409 = vpack.c.bf16 %v1309, %v1309
    %v1410 = vpack.c.bf16 %v1310, %v1310
    %v1411 = vpack.c.bf16 %v1311, %v1311
    %v1412 = vpack.c.bf16 %v1312, %v1312
    %v1413 = vpack.c.bf16 %v1313, %v1313
    %v1414 = vpack.c.bf16 %v1314, %v1314
    %v1415 = vpack.c.bf16 %v1315, %v1315
    %v1416 = vpack.c.bf16 %v1316, %v1316
    %v1417 = vpack.c.bf16 %v1317, %v1317
    %v1418 = vpack.c.bf16 %v1318, %v1318
    %v1419 = vpack.c.bf16 %v1319, %v1319
    %v1420 = vpack.c.bf16 %v1320, %v1320
    %v1421 = vpack.c.bf16 %v1321, %v1321
    %v1422 = vpack.c.bf16 %v1322, %v1322
    %v1423 = vpack.c.bf16 %v1323, %v1323
    %v1424 = vpack.c.bf16 %v1324, %v1324
    %v1425 = vpack.c.bf16 %v1325, %v1325
    %v1426 = vpack.c.bf16 %v1326, %v1326
    %v1427 = vpack.c.bf16 %v1327, %v1327
    %v1428 = vpack.c.bf16 %v1328, %v1328
    %v1429 = vpack.c.bf16 %v1329, %v1329
    %v1430 = vpack.c.bf16 %v1330, %v1330
    %v1431 = vpack.c.bf16 %v1331, %v1331
    %v1432 = vpack.c.bf16 %v1332, %v1332
    %v1433 = vpack.c.bf16 %v1333, %v1333
    %v1434 = vpack.c.bf16 %v1334, %v1334
    %v1435 = vpack.c.bf16 %v1335, %v1335
    %v1436 = vpack.c.bf16 %v1336, %v1336
    %v1437 = vpack.c.bf16 %v1337, %v1337
    %v1438 = vpack.c.bf16 %v1338, %v1338
    %v1439 = vpack.c.bf16 %v1339, %v1339
    %v1440 = vpack.c.bf16 %v1340, %v1340
    %v1441 = vpack.c.bf16 %v1341, %v1341
    %v1442 = vpack.c.bf16 %v1342, %v1342
    %v1443 = vpack.c.bf16 %v1343, %v1343
    %v1444 = vpack.c.bf16 %v1344, %v1344
    %v1445 = vpack.c.bf16 %v1345, %v1345
    %v1446 = vpack.c.bf16 %v1346, %v1346
    %v1447 = vpack.c.bf16 %v1347, %v1347
    %v1448 = vpack.c.bf16 %v1348, %v1348
    %v1449 = vpack.c.bf16 %v1349, %v1349
    %v1450 = vpack.c.bf16 %v1350, %v1350
    %v1451 = vpack.c.bf16 %v1351, %v1351
    %v1452 = vpack.c.bf16 %v1352, %v1352
    %v1453 = vpack.c.bf16 %v1353, %v1353
    %v1454 = vpack.c.bf16 %v1354, %v1354
    %v1455 = vpack.c.bf16 %v1355, %v1355
    %v1456 = vpack.c.bf16 %v1356, %v1356
    %v1457 = vpack.c.bf16 %v1357, %v1357
    %v1458 = vpack.c.bf16 %v1358, %v1358
    %v1459 = vpack.c.bf16 %v1359, %v1359
    %v1460 = vpack.c.bf16 %v1360, %v1360
    %v1461 = vpack.c.bf16 %v1361, %v1361
    %v1462 = vpack.c.bf16 %v1362, %v1362
    %v1463 = vpack.c.bf16 %v1363, %v1363
    %v1464 = vpack.c.bf16 %v1364, %v1364
    %v1465 = vpack.c.bf16 %v1365, %v1365
    %v1466 = vpack.c.bf16 %v1366, %v1366
    %v1467 = vpack.c.bf16 %v1367, %v1367
    %v1468 = vpack.c.bf16 %v1368, %v1368
    %v1469 = vpack.c.bf16 %v1369, %v1369
    %v1470 = vpack.c.bf16 %v1370, %v1370
    %v1471 = vpack.c.bf16 %v1371, %v1371
    %v1472 = vpack.c.bf16 %v1372, %v1372
    %v1473 = vpack.c.bf16 %v1373, %v1373
    %v1474 = vpack.c.bf16 %v1374, %v1374
    %v1475 = vpack.c.bf16 %v1375, %v1375
    %v1476 = vpack.c.bf16 %v1376, %v1376
    %v1477 = vpack.c.bf16 %v1377, %v1377
    %v1478 = vpack.c.bf16 %v1378, %v1378
    %v1479 = vpack.c.bf16 %v1379, %v1379
    %vm1480 = vcmask 257024
    %1481 = vst.msk [vmem:[%s3] sm:$0xf] %vm1480, %v1380
    %1482 = vst.msk [vmem:[%s3 + $0x4] sm:$0xf] %vm1480, %v1381
    %1483 = vst.msk [vmem:[%s3 + $0x8] sm:$0xf] %vm1480, %v1382
    %1484 = vst.msk [vmem:[%s3 + $0xc] sm:$0xf] %vm1480, %v1383
    %1485 = vst.msk [vmem:[%s3 + $0x10] sm:$0xf] %vm1480, %v1384
    %1486 = vst.msk [vmem:[%s3 + $0x14] sm:$0xf] %vm1480, %v1385
    %1487 = vst.msk [vmem:[%s3 + $0x18] sm:$0xf] %vm1480, %v1386
    %1488 = vst.msk [vmem:[%s3 + $0x1c] sm:$0xf] %vm1480, %v1387
    %1489 = vst.msk [vmem:[%s3 + $0x20] sm:$0xf] %vm1480, %v1388
    %1490 = vst.msk [vmem:[%s3 + $0x24] sm:$0xf] %vm1480, %v1389
    %1491 = vst.msk [vmem:[%s3 + $0x28] sm:$0xf] %vm1480, %v1390
    %1492 = vst.msk [vmem:[%s3 + $0x2c] sm:$0xf] %vm1480, %v1391
    %1493 = vst.msk [vmem:[%s3 + $0x30] sm:$0xf] %vm1480, %v1392
    %1494 = vst.msk [vmem:[%s3 + $0x34] sm:$0xf] %vm1480, %v1393
    %1495 = vst.msk [vmem:[%s3 + $0x38] sm:$0xf] %vm1480, %v1394
    %1496 = vst.msk [vmem:[%s3 + $0x3c] sm:$0xf] %vm1480, %v1395
    %1497 = vst.msk [vmem:[%s3 + $0x40] sm:$0xf] %vm1480, %v1396
    %1498 = vst.msk [vmem:[%s3 + $0x44] sm:$0xf] %vm1480, %v1397
    %1499 = vst.msk [vmem:[%s3 + $0x48] sm:$0xf] %vm1480, %v1398
    %1500 = vst.msk [vmem:[%s3 + $0x4c] sm:$0xf] %vm1480, %v1399
    %1501 = vst.msk [vmem:[%s3 + $0x50] sm:$0xf] %vm1480, %v1400
    %1502 = vst.msk [vmem:[%s3 + $0x54] sm:$0xf] %vm1480, %v1401
    %1503 = vst.msk [vmem:[%s3 + $0x58] sm:$0xf] %vm1480, %v1402
    %1504 = vst.msk [vmem:[%s3 + $0x5c] sm:$0xf] %vm1480, %v1403
    %1505 = vst.msk [vmem:[%s3 + $0x60] sm:$0xf] %vm1480, %v1404
    %1506 = vst.msk [vmem:[%s3 + $0x64] sm:$0xf] %vm1480, %v1405
    %1507 = vst.msk [vmem:[%s3 + $0x68] sm:$0xf] %vm1480, %v1406
    %1508 = vst.msk [vmem:[%s3 + $0x6c] sm:$0xf] %vm1480, %v1407
    %1509 = vst.msk [vmem:[%s3 + $0x70] sm:$0xf] %vm1480, %v1408
    %1510 = vst.msk [vmem:[%s3 + $0x74] sm:$0xf] %vm1480, %v1409
    %1511 = vst.msk [vmem:[%s3 + $0x78] sm:$0xf] %vm1480, %v1410
    %1512 = vst.msk [vmem:[%s3 + $0x7c] sm:$0xf] %vm1480, %v1411
    %1513 = vst.msk [vmem:[%s3 + $0x80] sm:$0xf] %vm1480, %v1412
    %1514 = vst.msk [vmem:[%s3 + $0x84] sm:$0xf] %vm1480, %v1413
    %1515 = vst.msk [vmem:[%s3 + $0x88] sm:$0xf] %vm1480, %v1414
    %1516 = vst.msk [vmem:[%s3 + $0x8c] sm:$0xf] %vm1480, %v1415
    %1517 = vst.msk [vmem:[%s3 + $0x90] sm:$0xf] %vm1480, %v1416
    %1518 = vst.msk [vmem:[%s3 + $0x94] sm:$0xf] %vm1480, %v1417
    %1519 = vst.msk [vmem:[%s3 + $0x98] sm:$0xf] %vm1480, %v1418
    %1520 = vst.msk [vmem:[%s3 + $0x9c] sm:$0xf] %vm1480, %v1419
    %1521 = vst.msk [vmem:[%s3 + $0xa0] sm:$0xf] %vm1480, %v1420
    %1522 = vst.msk [vmem:[%s3 + $0xa4] sm:$0xf] %vm1480, %v1421
    %1523 = vst.msk [vmem:[%s3 + $0xa8] sm:$0xf] %vm1480, %v1422
    %1524 = vst.msk [vmem:[%s3 + $0xac] sm:$0xf] %vm1480, %v1423
    %1525 = vst.msk [vmem:[%s3 + $0xb0] sm:$0xf] %vm1480, %v1424
    %1526 = vst.msk [vmem:[%s3 + $0xb4] sm:$0xf] %vm1480, %v1425
    %1527 = vst.msk [vmem:[%s3 + $0xb8] sm:$0xf] %vm1480, %v1426
    %1528 = vst.msk [vmem:[%s3 + $0xbc] sm:$0xf] %vm1480, %v1427
    %1529 = vst.msk [vmem:[%s3 + $0xc0] sm:$0xf] %vm1480, %v1428
    %1530 = vst.msk [vmem:[%s3 + $0xc4] sm:$0xf] %vm1480, %v1429
    %1531 = vst.msk [vmem:[%s3 + $0xc8] sm:$0xf] %vm1480, %v1430
    %1532 = vst.msk [vmem:[%s3 + $0xcc] sm:$0xf] %vm1480, %v1431
    %1533 = vst.msk [vmem:[%s3 + $0xd0] sm:$0xf] %vm1480, %v1432
    %1534 = vst.msk [vmem:[%s3 + $0xd4] sm:$0xf] %vm1480, %v1433
    %1535 = vst.msk [vmem:[%s3 + $0xd8] sm:$0xf] %vm1480, %v1434
    %1536 = vst.msk [vmem:[%s3 + $0xdc] sm:$0xf] %vm1480, %v1435
    %1537 = vst.msk [vmem:[%s3 + $0xe0] sm:$0xf] %vm1480, %v1436
    %1538 = vst.msk [vmem:[%s3 + $0xe4] sm:$0xf] %vm1480, %v1437
    %1539 = vst.msk [vmem:[%s3 + $0xe8] sm:$0xf] %vm1480, %v1438
    %1540 = vst.msk [vmem:[%s3 + $0xec] sm:$0xf] %vm1480, %v1439
    %1541 = vst.msk [vmem:[%s3 + $0xf0] sm:$0xf] %vm1480, %v1440
    %1542 = vst.msk [vmem:[%s3 + $0xf4] sm:$0xf] %vm1480, %v1441
    %1543 = vst.msk [vmem:[%s3 + $0xf8] sm:$0xf] %vm1480, %v1442
    %1544 = vst.msk [vmem:[%s3 + $0xfc] sm:$0xf] %vm1480, %v1443
    %1545 = vst.msk [vmem:[%s3 + $0x100] sm:$0xf] %vm1480, %v1444
    %1546 = vst.msk [vmem:[%s3 + $0x104] sm:$0xf] %vm1480, %v1445
    %1547 = vst.msk [vmem:[%s3 + $0x108] sm:$0xf] %vm1480, %v1446
    %1548 = vst.msk [vmem:[%s3 + $0x10c] sm:$0xf] %vm1480, %v1447
    %1549 = vst.msk [vmem:[%s3 + $0x110] sm:$0xf] %vm1480, %v1448
    %1550 = vst.msk [vmem:[%s3 + $0x114] sm:$0xf] %vm1480, %v1449
    %1551 = vst.msk [vmem:[%s3 + $0x118] sm:$0xf] %vm1480, %v1450
    %1552 = vst.msk [vmem:[%s3 + $0x11c] sm:$0xf] %vm1480, %v1451
    %1553 = vst.msk [vmem:[%s3 + $0x120] sm:$0xf] %vm1480, %v1452
    %1554 = vst.msk [vmem:[%s3 + $0x124] sm:$0xf] %vm1480, %v1453
    %1555 = vst.msk [vmem:[%s3 + $0x128] sm:$0xf] %vm1480, %v1454
    %1556 = vst.msk [vmem:[%s3 + $0x12c] sm:$0xf] %vm1480, %v1455
    %1557 = vst.msk [vmem:[%s3 + $0x130] sm:$0xf] %vm1480, %v1456
    %1558 = vst.msk [vmem:[%s3 + $0x134] sm:$0xf] %vm1480, %v1457
    %1559 = vst.msk [vmem:[%s3 + $0x138] sm:$0xf] %vm1480, %v1458
    %1560 = vst.msk [vmem:[%s3 + $0x13c] sm:$0xf] %vm1480, %v1459
    %1561 = vst.msk [vmem:[%s3 + $0x140] sm:$0xf] %vm1480, %v1460
    %1562 = vst.msk [vmem:[%s3 + $0x144] sm:$0xf] %vm1480, %v1461
    %1563 = vst.msk [vmem:[%s3 + $0x148] sm:$0xf] %vm1480, %v1462
    %1564 = vst.msk [vmem:[%s3 + $0x14c] sm:$0xf] %vm1480, %v1463
    %1565 = vst.msk [vmem:[%s3 + $0x150] sm:$0xf] %vm1480, %v1464
    %1566 = vst.msk [vmem:[%s3 + $0x154] sm:$0xf] %vm1480, %v1465
    %1567 = vst.msk [vmem:[%s3 + $0x158] sm:$0xf] %vm1480, %v1466
    %1568 = vst.msk [vmem:[%s3 + $0x15c] sm:$0xf] %vm1480, %v1467
    %1569 = vst.msk [vmem:[%s3 + $0x160] sm:$0xf] %vm1480, %v1468
    %1570 = vst.msk [vmem:[%s3 + $0x164] sm:$0xf] %vm1480, %v1469
    %1571 = vst.msk [vmem:[%s3 + $0x168] sm:$0xf] %vm1480, %v1470
    %1572 = vst.msk [vmem:[%s3 + $0x16c] sm:$0xf] %vm1480, %v1471
    %1573 = vst.msk [vmem:[%s3 + $0x170] sm:$0xf] %vm1480, %v1472
    %1574 = vst.msk [vmem:[%s3 + $0x174] sm:$0xf] %vm1480, %v1473
    %1575 = vst.msk [vmem:[%s3 + $0x178] sm:$0xf] %vm1480, %v1474
    %1576 = vst.msk [vmem:[%s3 + $0x17c] sm:$0xf] %vm1480, %v1475
    %1577 = vst.msk [vmem:[%s3 + $0x180] sm:$0xf] %vm1480, %v1476
    %1578 = vst.msk [vmem:[%s3 + $0x184] sm:$0xf] %vm1480, %v1477
    %1579 = vst.msk [vmem:[%s3 + $0x188] sm:$0xf] %vm1480, %v1478
    %1580 = vst.msk [vmem:[%s3 + $0x18c] sm:$0xf] %vm1480, %v1479
    // Predicated region
    $region18: #{tpu_custom_call.1} parent=1 // pred_check
      _
    $region19: #{tpu_custom_call.1} parent=1 // pred_check_branch
      %1582 = sbr.rel (0) target = $region21
    $region20: #{tpu_custom_call.1} parent=1 // pred_region
      _
    $region21: #{tpu_custom_call.1} parent=1 // pred_fallthru
      _
    // Predicated region
    $region22: #{tpu_custom_call.1} parent=1 // pred_check
      _
    $region23: #{tpu_custom_call.1} parent=1 // pred_check_branch
      %1584 = sbr.rel (0) target = $region25
    $region24: #{tpu_custom_call.1} parent=1 // pred_region
      _
    $region25: #{tpu_custom_call.1} parent=1 // pred_fallthru
      _
    %1585 = vsyncpa [#allocation3], 1

</llo_original>
